<compile_context>
chip_gen: v7x
topology: tpu7x:2x2x1
jax: 0.10.0
libtpu: 0.0.40
codegen_flags: <defaults>
</compile_context>

<pallas_src>
import functools

import numpy as np
import jax
import jax.numpy as jnp
from jax import lax
from jax.experimental import pallas as pl
from jax.experimental.pallas import tpu as pltpu


# ---------------------------------------------------------------------------
# Fused LSTM layer kernel: per time-block input GEMM + sequential recurrence.
# ---------------------------------------------------------------------------
def _lstm_fused_kernel(x_ref, wih_t_ref, whh_t_ref, b_ref,
                       out_ref, h_out_ref, c_out_ref,
                       gates_sc, h_sc, c_sc, *, t_true):
    # x_ref:     (block_t, block_b, K)   bf16 input activations
    # wih_t_ref: (K, 4Hp)                bf16, grid-invariant, single-buffered
    # whh_t_ref: (Hp, 4Hp)               bf16, grid-invariant, single-buffered
    # b_ref:     (1, 4Hp)                f32 combined bias (b_ih + b_hh)
    # out_ref:   (block_t, block_b, Hp)  bf16 per-step hidden (next layer input)
    # h_out_ref, c_out_ref: (block_b, Hp) f32 final states (written last block)
    # gates_sc:  (block_t*block_b, 4Hp)  f32 scratch: hoisted input projection
    # h_sc, c_sc:(block_b, Hp)           f32 carried state across time blocks
    tb = pl.program_id(1)
    n_tb = pl.num_programs(1)

    @pl.when(tb == 0)
    def _():
        h_sc[...] = jnp.zeros_like(h_sc)
        c_sc[...] = jnp.zeros_like(c_sc)

    block_t, block_b, k_in = x_ref.shape
    Hp = h_sc.shape[-1]

    # Hoisted input projection for this time block: one lane-dense MXU GEMM
    # (M = block_t*block_b), bf16 operands, f32 accumulate, bias folded in.
    x2d = x_ref[...].reshape(block_t * block_b, k_in)
    gates_sc[...] = (
        jnp.dot(x2d, wih_t_ref[...], preferred_element_type=jnp.float32)
        + b_ref[...])

    whh_t = whh_t_ref[...]   # bf16 recurrent weight, loaded once per block

    def step(t, carry):
        h_prev, c_prev = carry                      # f32 (block_b, Hp)
        row = pl.multiple_of(t * block_b, block_b)  # aligned sublane slice
        gates = gates_sc[pl.ds(row, block_b), :] + jnp.dot(
            h_prev.astype(jnp.bfloat16), whh_t,
            preferred_element_type=jnp.float32)     # (block_b, 4Hp) f32
        # sigmoid(x) == 0.5*(tanh(x/2)+1): one EUP op per gate (vs exp+recip).
        i_g = 0.5 * (jnp.tanh(0.5 * gates[:, 0 * Hp:1 * Hp]) + 1.0)
        f_g = 0.5 * (jnp.tanh(0.5 * gates[:, 1 * Hp:2 * Hp]) + 1.0)
        g_g = jnp.tanh(gates[:, 2 * Hp:3 * Hp])
        o_g = 0.5 * (jnp.tanh(0.5 * gates[:, 3 * Hp:4 * Hp]) + 1.0)
        c_new = f_g * c_prev + i_g * g_g
        h_new = o_g * jnp.tanh(c_new)
        # Freeze carried state on padded tail steps so the final (h, c)
        # correspond to the true sequence length.
        valid = (tb * block_t + t) < t_true
        h_new = jnp.where(valid, h_new, h_prev)
        c_new = jnp.where(valid, c_new, c_prev)
        out_ref[t] = h_new.astype(out_ref.dtype)
        return (h_new, c_new)

    h_fin, c_fin = lax.fori_loop(0, block_t, step, (h_sc[...], c_sc[...]),
                                 unroll=True)
    h_sc[...] = h_fin
    c_sc[...] = c_fin

    @pl.when(tb == n_tb - 1)        # gated final-state writes (not every step)
    def _():
        h_out_ref[...] = h_fin
        c_out_ref[...] = c_fin


# ---------------------------------------------------------------------------
# Wrapper: weight padding / pre-transpose (done ONCE, outside the grid loop)
# ---------------------------------------------------------------------------
def _round_up(x, m):
    return ((x + m - 1) // m) * m


def _pad_gate_rows(w, H, Hp):
    """(4H, K) -> (4Hp, K): gate g's H rows placed at offset g*Hp, rest zero."""
    K = w.shape[-1]
    w4 = jnp.pad(w.reshape(4, H, K), ((0, 0), (0, Hp - H), (0, 0)))
    return w4.reshape(4 * Hp, K)


def lstm_layer_pallas(x_p, w_ih, w_hh, b, *, H, Hp, t_true, block_t, block_b):
    """One LSTM layer over a padded, time-major sequence.

    x_p: (T_pad, B_pad, K) bf16.  Returns
      out_seq (T_pad, B_pad, Hp) bf16, h_T (B_pad, Hp) f32, c_T (B_pad, Hp) f32.
    """
    Tp, Bp, K = x_p.shape
    H4p = 4 * Hp

    # Pad weights per-gate so each gate occupies a lane-aligned Hp-wide slab.
    w_ih_p = _pad_gate_rows(w_ih, H, Hp)                       # (4Hp, in_sz)
    in_sz = w_ih.shape[1]
    if in_sz != K:                                             # deeper layers: pad input cols
        w_ih_p = jnp.pad(w_ih_p, ((0, 0), (0, K - in_sz)))
    w_hh_p = _pad_gate_rows(w_hh, H, Hp)                       # (4Hp, H)
    w_hh_p = jnp.pad(w_hh_p, ((0, 0), (0, Hp - H)))            # (4Hp, Hp)
    b_p = jnp.pad(b.reshape(4, H), ((0, 0), (0, Hp - H))).reshape(1, H4p)

    wih_t = jnp.transpose(w_ih_p).astype(jnp.bfloat16)         # (K, 4Hp)
    whh_t = jnp.transpose(w_hh_p).astype(jnp.bfloat16)         # (Hp, 4Hp)
    b_p = b_p.astype(jnp.float32)

    grid = (Bp // block_b, Tp // block_t)
    kernel = functools.partial(_lstm_fused_kernel, t_true=t_true)

    out_shapes = (
        jax.ShapeDtypeStruct((Tp, Bp, Hp), jnp.bfloat16),
        jax.ShapeDtypeStruct((Bp, Hp), jnp.float32),
        jax.ShapeDtypeStruct((Bp, Hp), jnp.float32),
    )
    grid_spec = pltpu.PrefetchScalarGridSpec(
        num_scalar_prefetch=0,
        grid=grid,
        in_specs=[
            pl.BlockSpec((block_t, block_b, K), lambda bb, tb: (tb, bb, 0)),
            pl.BlockSpec((K, H4p), lambda bb, tb: (0, 0),
                         pipeline_mode=pl.Buffered(1)),
            pl.BlockSpec((Hp, H4p), lambda bb, tb: (0, 0),
                         pipeline_mode=pl.Buffered(1)),
            pl.BlockSpec((1, H4p), lambda bb, tb: (0, 0),
                         pipeline_mode=pl.Buffered(1)),
        ],
        out_specs=[
            pl.BlockSpec((block_t, block_b, Hp), lambda bb, tb: (tb, bb, 0)),
            pl.BlockSpec((block_b, Hp), lambda bb, tb: (bb, 0)),
            pl.BlockSpec((block_b, Hp), lambda bb, tb: (bb, 0)),
        ],
        scratch_shapes=[
            pltpu.VMEM((block_t * block_b, H4p), jnp.float32),  # hoisted gates
            pltpu.VMEM((block_b, Hp), jnp.float32),             # h carry
            pltpu.VMEM((block_b, Hp), jnp.float32),             # c carry
        ],
    )
    return pl.pallas_call(
        kernel,
        out_shape=out_shapes,
        grid_spec=grid_spec,
        compiler_params=pltpu.CompilerParams(
            dimension_semantics=("parallel", "arbitrary"),
            vmem_limit_bytes=48 * 1024 * 1024),
    )(x_p, wih_t, whh_t, b_p)


def encoder_forward(src, params, *, max_block_t=16, batch_blocks=1):
    """Encoder.forward: returns (hidden, cell), each (num_layers, B, H).

    batch_blocks=2 on v7x runs independent batch halves on both TensorCores.
    """
    x = params["embed"][src].astype(jnp.float32)     # (T, B, E) embedding lookup
    # Dropout with p=0.0 is identity.
    T, B, _ = x.shape
    H = params["lstm"][0]["w_hh"].shape[1]

    Hp = _round_up(H, 128)                 # lane-dense gate slabs / stores
    Bp = _round_up(B, 8 * batch_blocks)    # sublane-aligned batch
    block_b = Bp // batch_blocks
    block_t = min(max_block_t, T)          # never shrink to 1 for awkward T...
    Tp = pl.cdiv(T, block_t) * block_t     # ...pad T and mask the tail instead

    x = jnp.pad(x, ((0, Tp - T), (0, Bp - B), (0, 0))).astype(jnp.bfloat16)

    hs, cs = [], []
    for layer in params["lstm"]:
        x, h_T, c_T = lstm_layer_pallas(
            x, layer["w_ih"], layer["w_hh"], layer["b"],
            H=H, Hp=Hp, t_true=T, block_t=block_t, block_b=block_b)
        hs.append(h_T[:B, :H])
        cs.append(c_T[:B, :H])
    return jnp.stack(hs, axis=0), jnp.stack(cs, axis=0)


# ----------------------- pure-JAX reference (for check) ---------------------
def _lstm_layer_ref(x_seq, w_ih, w_hh, b):
    H = w_hh.shape[1]
    B = x_seq.shape[1]

    def step(carry, x_t):
        h, c = carry
        gates = x_t @ w_ih.T + h @ w_hh.T + b
        i_g = jax.nn.sigmoid(gates[:, 0 * H:1 * H])
        f_g = jax.nn.sigmoid(gates[:, 1 * H:2 * H])
        g_g = jnp.tanh(gates[:, 2 * H:3 * H])
        o_g = jax.nn.sigmoid(gates[:, 3 * H:4 * H])
        c_n = f_g * c + i_g * g_g
        h_n = o_g * jnp.tanh(c_n)
        return (h_n, c_n), h_n

    init = (jnp.zeros((B, H), jnp.float32), jnp.zeros((B, H), jnp.float32))
    (h_T, c_T), outs = lax.scan(step, init, x_seq)
    return outs, h_T, c_T


def encoder_forward_ref(src, params):
    x = params["embed"][src]
    hs, cs = [], []
    for layer in params["lstm"]:
        x, h_T, c_T = _lstm_layer_ref(x, layer["w_ih"], layer["w_hh"],
                                      layer["b"])
        hs.append(h_T)
        cs.append(c_T)
    return jnp.stack(hs, 0), jnp.stack(cs, 0)


# --------------------------------- main --------------------------------------
def init_params(key, in_dim, embed_dim, hidden_dim, num_layers):
    keys = jax.random.split(key, 1 + 4 * num_layers)
    scale = 1.0 / np.sqrt(hidden_dim)
    params = {
        "embed": jax.random.normal(keys[0], (in_dim, embed_dim),
                                   jnp.float32) * 0.1,
        "lstm": [],
    }
    for l in range(num_layers):
        in_sz = embed_dim if l == 0 else hidden_dim
        k = keys[1 + 4 * l: 1 + 4 * (l + 1)]
        w_ih = jax.random.uniform(k[0], (4 * hidden_dim, in_sz), jnp.float32,
                                  -scale, scale)
        w_hh = jax.random.uniform(k[1], (4 * hidden_dim, hidden_dim),
                                  jnp.float32, -scale, scale)
        b_ih = jax.random.uniform(k[2], (4 * hidden_dim,), jnp.float32,
                                  -scale, scale)
        b_hh = jax.random.uniform(k[3], (4 * hidden_dim,), jnp.float32,
                                  -scale, scale)
        params["lstm"].append(
            {"w_ih": w_ih, "w_hh": w_hh, "b": b_ih + b_hh})
    return params


if __name__ == "__main__":
    in_dim, embed_dim, hidden_dim, num_layers = 16, 16, 32, 2
    seq_len, batch = 8, 2

    key = jax.random.PRNGKey(0)
    pkey, skey = jax.random.split(key)
    params = init_params(pkey, in_dim, embed_dim, hidden_dim, num_layers)
    src = jax.random.randint(skey, (seq_len, batch), 0, in_dim, jnp.int32)

    hidden, cell = encoder_forward(src, params)
    jax.block_until_ready((hidden, cell))

    hidden_ref, cell_ref = encoder_forward_ref(src, params)
    # bf16 MXU streaming => loosened tolerance (review-sanctioned).
    np.testing.assert_allclose(np.asarray(hidden, np.float32),
                               np.asarray(hidden_ref), rtol=2e-2, atol=2e-2)
    np.testing.assert_allclose(np.asarray(cell, np.float32),
                               np.asarray(cell_ref), rtol=2e-2, atol=2e-2)

    assert hidden.shape == (num_layers, batch, hidden_dim)
    assert cell.shape == (num_layers, batch, hidden_dim)
    print("KERNEL_OK")
</pallas_src>

<mosaic_0001>
module attributes {stable_mosaic.version = 11 : i64} {
  func.func @_lstm_fused_kernel(%arg0: i32, %arg1: i32, %arg2: memref<8x8x16xbf16, #tpu.memory_space<vmem>>, %arg3: memref<16x512xbf16, #tpu.memory_space<vmem>>, %arg4: memref<128x512xbf16, #tpu.memory_space<vmem>>, %arg5: memref<1x512xf32, #tpu.memory_space<vmem>>, %arg6: memref<8x8x128xbf16, #tpu.memory_space<vmem>>, %arg7: memref<8x128xf32, #tpu.memory_space<vmem>>, %arg8: memref<8x128xf32, #tpu.memory_space<vmem>>, %arg9: memref<64x512xf32, #tpu.memory_space<vmem>>, %arg10: memref<8x128xf32, #tpu.memory_space<vmem>>, %arg11: memref<8x128xf32, #tpu.memory_space<vmem>>) attributes {dimension_semantics = [#tpu.dimension_semantics<parallel>, #tpu.dimension_semantics<arbitrary>], iteration_bounds = array<i64: 1, 1>, scalar_prefetch = 0 : i64, scratch_operands = 3 : i64, tpu.core_type = #tpu.core_type<tc>, window_params = [{transform_indices = @transform_0, window_bounds = array<i64: 8, 8, 16>}, {pipeline_mode = #tpu.pipeline_mode<synchronous>, transform_indices = @transform_1, window_bounds = array<i64: 16, 512>}, {pipeline_mode = #tpu.pipeline_mode<synchronous>, transform_indices = @transform_2, window_bounds = array<i64: 128, 512>}, {pipeline_mode = #tpu.pipeline_mode<synchronous>, transform_indices = @transform_3, window_bounds = array<i64: 1, 512>}, {transform_indices = @transform_4, window_bounds = array<i64: 8, 8, 128>}, {transform_indices = @transform_5, window_bounds = array<i64: 8, 128>}, {transform_indices = @transform_6, window_bounds = array<i64: 8, 128>}]} {
    %c0_i32 = arith.constant 0 : i32
    %0 = arith.cmpi eq, %arg1, %c0_i32 : i32
    %1 = arith.extui %0 : i1 to i32
    %c0_i32_0 = arith.constant 0 : i32
    %2 = arith.cmpi ne, %1, %c0_i32_0 : i32
    scf.if %2 {
      %cst_150 = arith.constant 0.000000e+00 : f32
      %403 = vector.broadcast %cst_150 : f32 to vector<8x128xf32>
      %c0_151 = arith.constant 0 : index
      %c0_152 = arith.constant 0 : index
      %404 = vector.load %arg10[%c0_151, %c0_152] : memref<8x128xf32, #tpu.memory_space<vmem>>, vector<8x128xf32>
      tpu.vector_store %arg10[%c0_151, %c0_152], %403 {strides = array<i32>} : memref<8x128xf32, #tpu.memory_space<vmem>>, vector<8x128xf32>,
      %cst_153 = arith.constant 0.000000e+00 : f32
      %405 = vector.broadcast %cst_153 : f32 to vector<8x128xf32>
      %c0_154 = arith.constant 0 : index
      %c0_155 = arith.constant 0 : index
      %406 = vector.load %arg11[%c0_154, %c0_155] : memref<8x128xf32, #tpu.memory_space<vmem>>, vector<8x128xf32>
      tpu.vector_store %arg11[%c0_154, %c0_155], %405 {strides = array<i32>} : memref<8x128xf32, #tpu.memory_space<vmem>>, vector<8x128xf32>,
    } else {
    }
    %c0 = arith.constant 0 : index
    %c0_1 = arith.constant 0 : index
    %c0_2 = arith.constant 0 : index
    %3 = vector.load %arg2[%c0, %c0_1, %c0_2] : memref<8x8x16xbf16, #tpu.memory_space<vmem>>, vector<8x8x16xbf16>
    %4 = vector.shape_cast %3 : vector<8x8x16xbf16> to vector<64x16xbf16>
    %c0_3 = arith.constant 0 : index
    %c0_4 = arith.constant 0 : index
    %5 = vector.load %arg3[%c0_3, %c0_4] : memref<16x512xbf16, #tpu.memory_space<vmem>>, vector<16x512xbf16>
    %cst = arith.constant dense<0.000000e+00> : vector<64x512xf32>
    %6 = tpu.matmul %4, %5, %cst {dimension_numbers = #tpu.dot_dimension_numbers<[1], [0], [0], [1], [0, 0, 1, 1], [], []>} : vector<64x16xbf16>, vector<16x512xbf16>, vector<64x512xf32> -> vector<64x512xf32>
    %c0_5 = arith.constant 0 : index
    %c0_6 = arith.constant 0 : index
    %7 = vector.load %arg5[%c0_5, %c0_6] : memref<1x512xf32, #tpu.memory_space<vmem>>, vector<1x512xf32>
    %8 = vector.broadcast %7 : vector<1x512xf32> to vector<64x512xf32>
    %9 = arith.addf %6, %8 : vector<64x512xf32>
    %c0_7 = arith.constant 0 : index
    %c0_8 = arith.constant 0 : index
    %10 = vector.load %arg9[%c0_7, %c0_8] : memref<64x512xf32, #tpu.memory_space<vmem>>, vector<64x512xf32>
    tpu.vector_store %arg9[%c0_7, %c0_8], %9 {strides = array<i32>} : memref<64x512xf32, #tpu.memory_space<vmem>>, vector<64x512xf32>,
    %c0_9 = arith.constant 0 : index
    %c0_10 = arith.constant 0 : index
    %11 = vector.load %arg4[%c0_9, %c0_10] : memref<128x512xbf16, #tpu.memory_space<vmem>>, vector<128x512xbf16>
    %c0_11 = arith.constant 0 : index
    %c0_12 = arith.constant 0 : index
    %12 = vector.load %arg10[%c0_11, %c0_12] : memref<8x128xf32, #tpu.memory_space<vmem>>, vector<8x128xf32>
    %c0_13 = arith.constant 0 : index
    %c0_14 = arith.constant 0 : index
    %13 = vector.load %arg11[%c0_13, %c0_14] : memref<8x128xf32, #tpu.memory_space<vmem>>, vector<8x128xf32>
    %c0_i32_15 = arith.constant 0 : i32
    %c8_i32 = arith.constant 8 : i32
    %14 = arith.muli %c0_i32_15, %c8_i32 : i32
    %15 = tpu.assume_multiple %14, 8 : i32
    %16 = arith.index_cast %15 : i32 to index
    %c0_16 = arith.constant 0 : index
    %17 = vector.load %arg9[%16, %c0_16] : memref<64x512xf32, #tpu.memory_space<vmem>>, vector<8x512xf32>
    %18 = arith.truncf %12 : vector<8x128xf32> to vector<8x128xbf16>
    %cst_17 = arith.constant dense<0.000000e+00> : vector<8x512xf32>
    %19 = tpu.matmul %18, %11, %cst_17 {dimension_numbers = #tpu.dot_dimension_numbers<[1], [0], [0], [1], [0, 0, 1, 1], [], []>} : vector<8x128xbf16>, vector<128x512xbf16>, vector<8x512xf32> -> vector<8x512xf32>
    %20 = arith.addf %17, %19 : vector<8x512xf32>
    %21 = vector.extract_strided_slice %20 {offsets = [0, 0], sizes = [8, 128], strides = [1, 1]} : vector<8x512xf32> to vector<8x128xf32>
    %cst_18 = arith.constant 5.000000e-01 : f32
    %22 = vector.broadcast %cst_18 : f32 to vector<8x128xf32>
    %23 = arith.mulf %22, %21 : vector<8x128xf32>
    %24 = math.tanh %23 : vector<8x128xf32>
    %cst_19 = arith.constant 1.000000e+00 : f32
    %25 = vector.broadcast %cst_19 : f32 to vector<8x128xf32>
    %26 = arith.addf %24, %25 : vector<8x128xf32>
    %cst_20 = arith.constant 5.000000e-01 : f32
    %27 = vector.broadcast %cst_20 : f32 to vector<8x128xf32>
    %28 = arith.mulf %27, %26 : vector<8x128xf32>
    %29 = vector.extract_strided_slice %20 {offsets = [0, 128], sizes = [8, 128], strides = [1, 1]} : vector<8x512xf32> to vector<8x128xf32>
    %cst_21 = arith.constant 5.000000e-01 : f32
    %30 = vector.broadcast %cst_21 : f32 to vector<8x128xf32>
    %31 = arith.mulf %30, %29 : vector<8x128xf32>
    %32 = math.tanh %31 : vector<8x128xf32>
    %cst_22 = arith.constant 1.000000e+00 : f32
    %33 = vector.broadcast %cst_22 : f32 to vector<8x128xf32>
    %34 = arith.addf %32, %33 : vector<8x128xf32>
    %cst_23 = arith.constant 5.000000e-01 : f32
    %35 = vector.broadcast %cst_23 : f32 to vector<8x128xf32>
    %36 = arith.mulf %35, %34 : vector<8x128xf32>
    %37 = vector.extract_strided_slice %20 {offsets = [0, 256], sizes = [8, 128], strides = [1, 1]} : vector<8x512xf32> to vector<8x128xf32>
    %38 = math.tanh %37 : vector<8x128xf32>
    %39 = vector.extract_strided_slice %20 {offsets = [0, 384], sizes = [8, 128], strides = [1, 1]} : vector<8x512xf32> to vector<8x128xf32>
    %cst_24 = arith.constant 5.000000e-01 : f32
    %40 = vector.broadcast %cst_24 : f32 to vector<8x128xf32>
    %41 = arith.mulf %40, %39 : vector<8x128xf32>
    %42 = math.tanh %41 : vector<8x128xf32>
    %cst_25 = arith.constant 1.000000e+00 : f32
    %43 = vector.broadcast %cst_25 : f32 to vector<8x128xf32>
    %44 = arith.addf %42, %43 : vector<8x128xf32>
    %cst_26 = arith.constant 5.000000e-01 : f32
    %45 = vector.broadcast %cst_26 : f32 to vector<8x128xf32>
    %46 = arith.mulf %45, %44 : vector<8x128xf32>
    %47 = arith.mulf %36, %13 : vector<8x128xf32>
    %48 = arith.mulf %28, %38 : vector<8x128xf32>
    %49 = arith.addf %47, %48 : vector<8x128xf32>
    %50 = math.tanh %49 : vector<8x128xf32>
    %51 = arith.mulf %46, %50 : vector<8x128xf32>
    %c8_i32_27 = arith.constant 8 : i32
    %52 = arith.muli %arg1, %c8_i32_27 : i32
    %53 = arith.addi %52, %c0_i32_15 : i32
    %c8_i32_28 = arith.constant 8 : i32
    %54 = arith.cmpi slt, %53, %c8_i32_28 : i32
    %55 = arith.select %54, %51, %12 : vector<8x128xf32>
    %56 = arith.select %54, %49, %13 : vector<8x128xf32>
    %57 = arith.truncf %55 : vector<8x128xf32> to vector<8x128xbf16>
    %58 = arith.index_cast %c0_i32_15 : i32 to index
    %c0_29 = arith.constant 0 : index
    %c0_30 = arith.constant 0 : index
    %59 = vector.load %arg6[%58, %c0_29, %c0_30] : memref<8x8x128xbf16, #tpu.memory_space<vmem>>, vector<1x8x128xbf16>
    %60 = vector.shape_cast %59 : vector<1x8x128xbf16> to vector<8x128xbf16>
    %61 = vector.shape_cast %57 : vector<8x128xbf16> to vector<1x8x128xbf16>
    tpu.vector_store %arg6[%58, %c0_29, %c0_30], %61 {strides = array<i32>} : memref<8x8x128xbf16, #tpu.memory_space<vmem>>, vector<1x8x128xbf16>,
    %c1_i32 = arith.constant 1 : i32
    %c8_i32_31 = arith.constant 8 : i32
    %62 = arith.muli %c1_i32, %c8_i32_31 : i32
    %63 = tpu.assume_multiple %62, 8 : i32
    %64 = arith.index_cast %63 : i32 to index
    %c0_32 = arith.constant 0 : index
    %65 = vector.load %arg9[%64, %c0_32] : memref<64x512xf32, #tpu.memory_space<vmem>>, vector<8x512xf32>
    %66 = arith.truncf %55 : vector<8x128xf32> to vector<8x128xbf16>
    %cst_33 = arith.constant dense<0.000000e+00> : vector<8x512xf32>
    %67 = tpu.matmul %66, %11, %cst_33 {dimension_numbers = #tpu.dot_dimension_numbers<[1], [0], [0], [1], [0, 0, 1, 1], [], []>} : vector<8x128xbf16>, vector<128x512xbf16>, vector<8x512xf32> -> vector<8x512xf32>
    %68 = arith.addf %65, %67 : vector<8x512xf32>
    %69 = vector.extract_strided_slice %68 {offsets = [0, 0], sizes = [8, 128], strides = [1, 1]} : vector<8x512xf32> to vector<8x128xf32>
    %cst_34 = arith.constant 5.000000e-01 : f32
    %70 = vector.broadcast %cst_34 : f32 to vector<8x128xf32>
    %71 = arith.mulf %70, %69 : vector<8x128xf32>
    %72 = math.tanh %71 : vector<8x128xf32>
    %cst_35 = arith.constant 1.000000e+00 : f32
    %73 = vector.broadcast %cst_35 : f32 to vector<8x128xf32>
    %74 = arith.addf %72, %73 : vector<8x128xf32>
    %cst_36 = arith.constant 5.000000e-01 : f32
    %75 = vector.broadcast %cst_36 : f32 to vector<8x128xf32>
    %76 = arith.mulf %75, %74 : vector<8x128xf32>
    %77 = vector.extract_strided_slice %68 {offsets = [0, 128], sizes = [8, 128], strides = [1, 1]} : vector<8x512xf32> to vector<8x128xf32>
    %cst_37 = arith.constant 5.000000e-01 : f32
    %78 = vector.broadcast %cst_37 : f32 to vector<8x128xf32>
    %79 = arith.mulf %78, %77 : vector<8x128xf32>
    %80 = math.tanh %79 : vector<8x128xf32>
    %cst_38 = arith.constant 1.000000e+00 : f32
    %81 = vector.broadcast %cst_38 : f32 to vector<8x128xf32>
    %82 = arith.addf %80, %81 : vector<8x128xf32>
    %cst_39 = arith.constant 5.000000e-01 : f32
    %83 = vector.broadcast %cst_39 : f32 to vector<8x128xf32>
    %84 = arith.mulf %83, %82 : vector<8x128xf32>
    %85 = vector.extract_strided_slice %68 {offsets = [0, 256], sizes = [8, 128], strides = [1, 1]} : vector<8x512xf32> to vector<8x128xf32>
    %86 = math.tanh %85 : vector<8x128xf32>
    %87 = vector.extract_strided_slice %68 {offsets = [0, 384], sizes = [8, 128], strides = [1, 1]} : vector<8x512xf32> to vector<8x128xf32>
    %cst_40 = arith.constant 5.000000e-01 : f32
    %88 = vector.broadcast %cst_40 : f32 to vector<8x128xf32>
    %89 = arith.mulf %88, %87 : vector<8x128xf32>
    %90 = math.tanh %89 : vector<8x128xf32>
    %cst_41 = arith.constant 1.000000e+00 : f32
    %91 = vector.broadcast %cst_41 : f32 to vector<8x128xf32>
    %92 = arith.addf %90, %91 : vector<8x128xf32>
    %cst_42 = arith.constant 5.000000e-01 : f32
    %93 = vector.broadcast %cst_42 : f32 to vector<8x128xf32>
    %94 = arith.mulf %93, %92 : vector<8x128xf32>
    %95 = arith.mulf %84, %56 : vector<8x128xf32>
    %96 = arith.mulf %76, %86 : vector<8x128xf32>
    %97 = arith.addf %95, %96 : vector<8x128xf32>
    %98 = math.tanh %97 : vector<8x128xf32>
    %99 = arith.mulf %94, %98 : vector<8x128xf32>
    %c8_i32_43 = arith.constant 8 : i32
    %100 = arith.muli %arg1, %c8_i32_43 : i32
    %101 = arith.addi %100, %c1_i32 : i32
    %c8_i32_44 = arith.constant 8 : i32
    %102 = arith.cmpi slt, %101, %c8_i32_44 : i32
    %103 = arith.select %102, %99, %55 : vector<8x128xf32>
    %104 = arith.select %102, %97, %56 : vector<8x128xf32>
    %105 = arith.truncf %103 : vector<8x128xf32> to vector<8x128xbf16>
    %106 = arith.index_cast %c1_i32 : i32 to index
    %c0_45 = arith.constant 0 : index
    %c0_46 = arith.constant 0 : index
    %107 = vector.load %arg6[%106, %c0_45, %c0_46] : memref<8x8x128xbf16, #tpu.memory_space<vmem>>, vector<1x8x128xbf16>
    %108 = vector.shape_cast %107 : vector<1x8x128xbf16> to vector<8x128xbf16>
    %109 = vector.shape_cast %105 : vector<8x128xbf16> to vector<1x8x128xbf16>
    tpu.vector_store %arg6[%106, %c0_45, %c0_46], %109 {strides = array<i32>} : memref<8x8x128xbf16, #tpu.memory_space<vmem>>, vector<1x8x128xbf16>,
    %c2_i32 = arith.constant 2 : i32
    %c8_i32_47 = arith.constant 8 : i32
    %110 = arith.muli %c2_i32, %c8_i32_47 : i32
    %111 = tpu.assume_multiple %110, 8 : i32
    %112 = arith.index_cast %111 : i32 to index
    %c0_48 = arith.constant 0 : index
    %113 = vector.load %arg9[%112, %c0_48] : memref<64x512xf32, #tpu.memory_space<vmem>>, vector<8x512xf32>
    %114 = arith.truncf %103 : vector<8x128xf32> to vector<8x128xbf16>
    %cst_49 = arith.constant dense<0.000000e+00> : vector<8x512xf32>
    %115 = tpu.matmul %114, %11, %cst_49 {dimension_numbers = #tpu.dot_dimension_numbers<[1], [0], [0], [1], [0, 0, 1, 1], [], []>} : vector<8x128xbf16>, vector<128x512xbf16>, vector<8x512xf32> -> vector<8x512xf32>
    %116 = arith.addf %113, %115 : vector<8x512xf32>
    %117 = vector.extract_strided_slice %116 {offsets = [0, 0], sizes = [8, 128], strides = [1, 1]} : vector<8x512xf32> to vector<8x128xf32>
    %cst_50 = arith.constant 5.000000e-01 : f32
    %118 = vector.broadcast %cst_50 : f32 to vector<8x128xf32>
    %119 = arith.mulf %118, %117 : vector<8x128xf32>
    %120 = math.tanh %119 : vector<8x128xf32>
    %cst_51 = arith.constant 1.000000e+00 : f32
    %121 = vector.broadcast %cst_51 : f32 to vector<8x128xf32>
    %122 = arith.addf %120, %121 : vector<8x128xf32>
    %cst_52 = arith.constant 5.000000e-01 : f32
    %123 = vector.broadcast %cst_52 : f32 to vector<8x128xf32>
    %124 = arith.mulf %123, %122 : vector<8x128xf32>
    %125 = vector.extract_strided_slice %116 {offsets = [0, 128], sizes = [8, 128], strides = [1, 1]} : vector<8x512xf32> to vector<8x128xf32>
    %cst_53 = arith.constant 5.000000e-01 : f32
    %126 = vector.broadcast %cst_53 : f32 to vector<8x128xf32>
    %127 = arith.mulf %126, %125 : vector<8x128xf32>
    %128 = math.tanh %127 : vector<8x128xf32>
    %cst_54 = arith.constant 1.000000e+00 : f32
    %129 = vector.broadcast %cst_54 : f32 to vector<8x128xf32>
    %130 = arith.addf %128, %129 : vector<8x128xf32>
    %cst_55 = arith.constant 5.000000e-01 : f32
    %131 = vector.broadcast %cst_55 : f32 to vector<8x128xf32>
    %132 = arith.mulf %131, %130 : vector<8x128xf32>
    %133 = vector.extract_strided_slice %116 {offsets = [0, 256], sizes = [8, 128], strides = [1, 1]} : vector<8x512xf32> to vector<8x128xf32>
    %134 = math.tanh %133 : vector<8x128xf32>
    %135 = vector.extract_strided_slice %116 {offsets = [0, 384], sizes = [8, 128], strides = [1, 1]} : vector<8x512xf32> to vector<8x128xf32>
    %cst_56 = arith.constant 5.000000e-01 : f32
    %136 = vector.broadcast %cst_56 : f32 to vector<8x128xf32>
    %137 = arith.mulf %136, %135 : vector<8x128xf32>
    %138 = math.tanh %137 : vector<8x128xf32>
    %cst_57 = arith.constant 1.000000e+00 : f32
    %139 = vector.broadcast %cst_57 : f32 to vector<8x128xf32>
    %140 = arith.addf %138, %139 : vector<8x128xf32>
    %cst_58 = arith.constant 5.000000e-01 : f32
    %141 = vector.broadcast %cst_58 : f32 to vector<8x128xf32>
    %142 = arith.mulf %141, %140 : vector<8x128xf32>
    %143 = arith.mulf %132, %104 : vector<8x128xf32>
    %144 = arith.mulf %124, %134 : vector<8x128xf32>
    %145 = arith.addf %143, %144 : vector<8x128xf32>
    %146 = math.tanh %145 : vector<8x128xf32>
    %147 = arith.mulf %142, %146 : vector<8x128xf32>
    %c8_i32_59 = arith.constant 8 : i32
    %148 = arith.muli %arg1, %c8_i32_59 : i32
    %149 = arith.addi %148, %c2_i32 : i32
    %c8_i32_60 = arith.constant 8 : i32
    %150 = arith.cmpi slt, %149, %c8_i32_60 : i32
    %151 = arith.select %150, %147, %103 : vector<8x128xf32>
    %152 = arith.select %150, %145, %104 : vector<8x128xf32>
    %153 = arith.truncf %151 : vector<8x128xf32> to vector<8x128xbf16>
    %154 = arith.index_cast %c2_i32 : i32 to index
    %c0_61 = arith.constant 0 : index
    %c0_62 = arith.constant 0 : index
    %155 = vector.load %arg6[%154, %c0_61, %c0_62] : memref<8x8x128xbf16, #tpu.memory_space<vmem>>, vector<1x8x128xbf16>
    %156 = vector.shape_cast %155 : vector<1x8x128xbf16> to vector<8x128xbf16>
    %157 = vector.shape_cast %153 : vector<8x128xbf16> to vector<1x8x128xbf16>
    tpu.vector_store %arg6[%154, %c0_61, %c0_62], %157 {strides = array<i32>} : memref<8x8x128xbf16, #tpu.memory_space<vmem>>, vector<1x8x128xbf16>,
    %c3_i32 = arith.constant 3 : i32
    %c8_i32_63 = arith.constant 8 : i32
    %158 = arith.muli %c3_i32, %c8_i32_63 : i32
    %159 = tpu.assume_multiple %158, 8 : i32
    %160 = arith.index_cast %159 : i32 to index
    %c0_64 = arith.constant 0 : index
    %161 = vector.load %arg9[%160, %c0_64] : memref<64x512xf32, #tpu.memory_space<vmem>>, vector<8x512xf32>
    %162 = arith.truncf %151 : vector<8x128xf32> to vector<8x128xbf16>
    %cst_65 = arith.constant dense<0.000000e+00> : vector<8x512xf32>
    %163 = tpu.matmul %162, %11, %cst_65 {dimension_numbers = #tpu.dot_dimension_numbers<[1], [0], [0], [1], [0, 0, 1, 1], [], []>} : vector<8x128xbf16>, vector<128x512xbf16>, vector<8x512xf32> -> vector<8x512xf32>
    %164 = arith.addf %161, %163 : vector<8x512xf32>
    %165 = vector.extract_strided_slice %164 {offsets = [0, 0], sizes = [8, 128], strides = [1, 1]} : vector<8x512xf32> to vector<8x128xf32>
    %cst_66 = arith.constant 5.000000e-01 : f32
    %166 = vector.broadcast %cst_66 : f32 to vector<8x128xf32>
    %167 = arith.mulf %166, %165 : vector<8x128xf32>
    %168 = math.tanh %167 : vector<8x128xf32>
    %cst_67 = arith.constant 1.000000e+00 : f32
    %169 = vector.broadcast %cst_67 : f32 to vector<8x128xf32>
    %170 = arith.addf %168, %169 : vector<8x128xf32>
    %cst_68 = arith.constant 5.000000e-01 : f32
    %171 = vector.broadcast %cst_68 : f32 to vector<8x128xf32>
    %172 = arith.mulf %171, %170 : vector<8x128xf32>
    %173 = vector.extract_strided_slice %164 {offsets = [0, 128], sizes = [8, 128], strides = [1, 1]} : vector<8x512xf32> to vector<8x128xf32>
    %cst_69 = arith.constant 5.000000e-01 : f32
    %174 = vector.broadcast %cst_69 : f32 to vector<8x128xf32>
    %175 = arith.mulf %174, %173 : vector<8x128xf32>
    %176 = math.tanh %175 : vector<8x128xf32>
    %cst_70 = arith.constant 1.000000e+00 : f32
    %177 = vector.broadcast %cst_70 : f32 to vector<8x128xf32>
    %178 = arith.addf %176, %177 : vector<8x128xf32>
    %cst_71 = arith.constant 5.000000e-01 : f32
    %179 = vector.broadcast %cst_71 : f32 to vector<8x128xf32>
    %180 = arith.mulf %179, %178 : vector<8x128xf32>
    %181 = vector.extract_strided_slice %164 {offsets = [0, 256], sizes = [8, 128], strides = [1, 1]} : vector<8x512xf32> to vector<8x128xf32>
    %182 = math.tanh %181 : vector<8x128xf32>
    %183 = vector.extract_strided_slice %164 {offsets = [0, 384], sizes = [8, 128], strides = [1, 1]} : vector<8x512xf32> to vector<8x128xf32>
    %cst_72 = arith.constant 5.000000e-01 : f32
    %184 = vector.broadcast %cst_72 : f32 to vector<8x128xf32>
    %185 = arith.mulf %184, %183 : vector<8x128xf32>
    %186 = math.tanh %185 : vector<8x128xf32>
    %cst_73 = arith.constant 1.000000e+00 : f32
    %187 = vector.broadcast %cst_73 : f32 to vector<8x128xf32>
    %188 = arith.addf %186, %187 : vector<8x128xf32>
    %cst_74 = arith.constant 5.000000e-01 : f32
    %189 = vector.broadcast %cst_74 : f32 to vector<8x128xf32>
    %190 = arith.mulf %189, %188 : vector<8x128xf32>
    %191 = arith.mulf %180, %152 : vector<8x128xf32>
    %192 = arith.mulf %172, %182 : vector<8x128xf32>
    %193 = arith.addf %191, %192 : vector<8x128xf32>
    %194 = math.tanh %193 : vector<8x128xf32>
    %195 = arith.mulf %190, %194 : vector<8x128xf32>
    %c8_i32_75 = arith.constant 8 : i32
    %196 = arith.muli %arg1, %c8_i32_75 : i32
    %197 = arith.addi %196, %c3_i32 : i32
    %c8_i32_76 = arith.constant 8 : i32
    %198 = arith.cmpi slt, %197, %c8_i32_76 : i32
    %199 = arith.select %198, %195, %151 : vector<8x128xf32>
    %200 = arith.select %198, %193, %152 : vector<8x128xf32>
    %201 = arith.truncf %199 : vector<8x128xf32> to vector<8x128xbf16>
    %202 = arith.index_cast %c3_i32 : i32 to index
    %c0_77 = arith.constant 0 : index
    %c0_78 = arith.constant 0 : index
    %203 = vector.load %arg6[%202, %c0_77, %c0_78] : memref<8x8x128xbf16, #tpu.memory_space<vmem>>, vector<1x8x128xbf16>
    %204 = vector.shape_cast %203 : vector<1x8x128xbf16> to vector<8x128xbf16>
    %205 = vector.shape_cast %201 : vector<8x128xbf16> to vector<1x8x128xbf16>
    tpu.vector_store %arg6[%202, %c0_77, %c0_78], %205 {strides = array<i32>} : memref<8x8x128xbf16, #tpu.memory_space<vmem>>, vector<1x8x128xbf16>,
    %c4_i32 = arith.constant 4 : i32
    %c8_i32_79 = arith.constant 8 : i32
    %206 = arith.muli %c4_i32, %c8_i32_79 : i32
    %207 = tpu.assume_multiple %206, 8 : i32
    %208 = arith.index_cast %207 : i32 to index
    %c0_80 = arith.constant 0 : index
    %209 = vector.load %arg9[%208, %c0_80] : memref<64x512xf32, #tpu.memory_space<vmem>>, vector<8x512xf32>
    %210 = arith.truncf %199 : vector<8x128xf32> to vector<8x128xbf16>
    %cst_81 = arith.constant dense<0.000000e+00> : vector<8x512xf32>
    %211 = tpu.matmul %210, %11, %cst_81 {dimension_numbers = #tpu.dot_dimension_numbers<[1], [0], [0], [1], [0, 0, 1, 1], [], []>} : vector<8x128xbf16>, vector<128x512xbf16>, vector<8x512xf32> -> vector<8x512xf32>
    %212 = arith.addf %209, %211 : vector<8x512xf32>
    %213 = vector.extract_strided_slice %212 {offsets = [0, 0], sizes = [8, 128], strides = [1, 1]} : vector<8x512xf32> to vector<8x128xf32>
    %cst_82 = arith.constant 5.000000e-01 : f32
    %214 = vector.broadcast %cst_82 : f32 to vector<8x128xf32>
    %215 = arith.mulf %214, %213 : vector<8x128xf32>
    %216 = math.tanh %215 : vector<8x128xf32>
    %cst_83 = arith.constant 1.000000e+00 : f32
    %217 = vector.broadcast %cst_83 : f32 to vector<8x128xf32>
    %218 = arith.addf %216, %217 : vector<8x128xf32>
    %cst_84 = arith.constant 5.000000e-01 : f32
    %219 = vector.broadcast %cst_84 : f32 to vector<8x128xf32>
    %220 = arith.mulf %219, %218 : vector<8x128xf32>
    %221 = vector.extract_strided_slice %212 {offsets = [0, 128], sizes = [8, 128], strides = [1, 1]} : vector<8x512xf32> to vector<8x128xf32>
    %cst_85 = arith.constant 5.000000e-01 : f32
    %222 = vector.broadcast %cst_85 : f32 to vector<8x128xf32>
    %223 = arith.mulf %222, %221 : vector<8x128xf32>
    %224 = math.tanh %223 : vector<8x128xf32>
    %cst_86 = arith.constant 1.000000e+00 : f32
    %225 = vector.broadcast %cst_86 : f32 to vector<8x128xf32>
    %226 = arith.addf %224, %225 : vector<8x128xf32>
    %cst_87 = arith.constant 5.000000e-01 : f32
    %227 = vector.broadcast %cst_87 : f32 to vector<8x128xf32>
    %228 = arith.mulf %227, %226 : vector<8x128xf32>
    %229 = vector.extract_strided_slice %212 {offsets = [0, 256], sizes = [8, 128], strides = [1, 1]} : vector<8x512xf32> to vector<8x128xf32>
    %230 = math.tanh %229 : vector<8x128xf32>
    %231 = vector.extract_strided_slice %212 {offsets = [0, 384], sizes = [8, 128], strides = [1, 1]} : vector<8x512xf32> to vector<8x128xf32>
    %cst_88 = arith.constant 5.000000e-01 : f32
    %232 = vector.broadcast %cst_88 : f32 to vector<8x128xf32>
    %233 = arith.mulf %232, %231 : vector<8x128xf32>
    %234 = math.tanh %233 : vector<8x128xf32>
    %cst_89 = arith.constant 1.000000e+00 : f32
    %235 = vector.broadcast %cst_89 : f32 to vector<8x128xf32>
    %236 = arith.addf %234, %235 : vector<8x128xf32>
    %cst_90 = arith.constant 5.000000e-01 : f32
    %237 = vector.broadcast %cst_90 : f32 to vector<8x128xf32>
    %238 = arith.mulf %237, %236 : vector<8x128xf32>
    %239 = arith.mulf %228, %200 : vector<8x128xf32>
    %240 = arith.mulf %220, %230 : vector<8x128xf32>
    %241 = arith.addf %239, %240 : vector<8x128xf32>
    %242 = math.tanh %241 : vector<8x128xf32>
    %243 = arith.mulf %238, %242 : vector<8x128xf32>
    %c8_i32_91 = arith.constant 8 : i32
    %244 = arith.muli %arg1, %c8_i32_91 : i32
    %245 = arith.addi %244, %c4_i32 : i32
    %c8_i32_92 = arith.constant 8 : i32
    %246 = arith.cmpi slt, %245, %c8_i32_92 : i32
    %247 = arith.select %246, %243, %199 : vector<8x128xf32>
    %248 = arith.select %246, %241, %200 : vector<8x128xf32>
    %249 = arith.truncf %247 : vector<8x128xf32> to vector<8x128xbf16>
    %250 = arith.index_cast %c4_i32 : i32 to index
    %c0_93 = arith.constant 0 : index
    %c0_94 = arith.constant 0 : index
    %251 = vector.load %arg6[%250, %c0_93, %c0_94] : memref<8x8x128xbf16, #tpu.memory_space<vmem>>, vector<1x8x128xbf16>
    %252 = vector.shape_cast %251 : vector<1x8x128xbf16> to vector<8x128xbf16>
    %253 = vector.shape_cast %249 : vector<8x128xbf16> to vector<1x8x128xbf16>
    tpu.vector_store %arg6[%250, %c0_93, %c0_94], %253 {strides = array<i32>} : memref<8x8x128xbf16, #tpu.memory_space<vmem>>, vector<1x8x128xbf16>,
    %c5_i32 = arith.constant 5 : i32
    %c8_i32_95 = arith.constant 8 : i32
    %254 = arith.muli %c5_i32, %c8_i32_95 : i32
    %255 = tpu.assume_multiple %254, 8 : i32
    %256 = arith.index_cast %255 : i32 to index
    %c0_96 = arith.constant 0 : index
    %257 = vector.load %arg9[%256, %c0_96] : memref<64x512xf32, #tpu.memory_space<vmem>>, vector<8x512xf32>
    %258 = arith.truncf %247 : vector<8x128xf32> to vector<8x128xbf16>
    %cst_97 = arith.constant dense<0.000000e+00> : vector<8x512xf32>
    %259 = tpu.matmul %258, %11, %cst_97 {dimension_numbers = #tpu.dot_dimension_numbers<[1], [0], [0], [1], [0, 0, 1, 1], [], []>} : vector<8x128xbf16>, vector<128x512xbf16>, vector<8x512xf32> -> vector<8x512xf32>
    %260 = arith.addf %257, %259 : vector<8x512xf32>
    %261 = vector.extract_strided_slice %260 {offsets = [0, 0], sizes = [8, 128], strides = [1, 1]} : vector<8x512xf32> to vector<8x128xf32>
    %cst_98 = arith.constant 5.000000e-01 : f32
    %262 = vector.broadcast %cst_98 : f32 to vector<8x128xf32>
    %263 = arith.mulf %262, %261 : vector<8x128xf32>
    %264 = math.tanh %263 : vector<8x128xf32>
    %cst_99 = arith.constant 1.000000e+00 : f32
    %265 = vector.broadcast %cst_99 : f32 to vector<8x128xf32>
    %266 = arith.addf %264, %265 : vector<8x128xf32>
    %cst_100 = arith.constant 5.000000e-01 : f32
    %267 = vector.broadcast %cst_100 : f32 to vector<8x128xf32>
    %268 = arith.mulf %267, %266 : vector<8x128xf32>
    %269 = vector.extract_strided_slice %260 {offsets = [0, 128], sizes = [8, 128], strides = [1, 1]} : vector<8x512xf32> to vector<8x128xf32>
    %cst_101 = arith.constant 5.000000e-01 : f32
    %270 = vector.broadcast %cst_101 : f32 to vector<8x128xf32>
    %271 = arith.mulf %270, %269 : vector<8x128xf32>
    %272 = math.tanh %271 : vector<8x128xf32>
    %cst_102 = arith.constant 1.000000e+00 : f32
    %273 = vector.broadcast %cst_102 : f32 to vector<8x128xf32>
    %274 = arith.addf %272, %273 : vector<8x128xf32>
    %cst_103 = arith.constant 5.000000e-01 : f32
    %275 = vector.broadcast %cst_103 : f32 to vector<8x128xf32>
    %276 = arith.mulf %275, %274 : vector<8x128xf32>
    %277 = vector.extract_strided_slice %260 {offsets = [0, 256], sizes = [8, 128], strides = [1, 1]} : vector<8x512xf32> to vector<8x128xf32>
    %278 = math.tanh %277 : vector<8x128xf32>
    %279 = vector.extract_strided_slice %260 {offsets = [0, 384], sizes = [8, 128], strides = [1, 1]} : vector<8x512xf32> to vector<8x128xf32>
    %cst_104 = arith.constant 5.000000e-01 : f32
    %280 = vector.broadcast %cst_104 : f32 to vector<8x128xf32>
    %281 = arith.mulf %280, %279 : vector<8x128xf32>
    %282 = math.tanh %281 : vector<8x128xf32>
    %cst_105 = arith.constant 1.000000e+00 : f32
    %283 = vector.broadcast %cst_105 : f32 to vector<8x128xf32>
    %284 = arith.addf %282, %283 : vector<8x128xf32>
    %cst_106 = arith.constant 5.000000e-01 : f32
    %285 = vector.broadcast %cst_106 : f32 to vector<8x128xf32>
    %286 = arith.mulf %285, %284 : vector<8x128xf32>
    %287 = arith.mulf %276, %248 : vector<8x128xf32>
    %288 = arith.mulf %268, %278 : vector<8x128xf32>
    %289 = arith.addf %287, %288 : vector<8x128xf32>
    %290 = math.tanh %289 : vector<8x128xf32>
    %291 = arith.mulf %286, %290 : vector<8x128xf32>
    %c8_i32_107 = arith.constant 8 : i32
    %292 = arith.muli %arg1, %c8_i32_107 : i32
    %293 = arith.addi %292, %c5_i32 : i32
    %c8_i32_108 = arith.constant 8 : i32
    %294 = arith.cmpi slt, %293, %c8_i32_108 : i32
    %295 = arith.select %294, %291, %247 : vector<8x128xf32>
    %296 = arith.select %294, %289, %248 : vector<8x128xf32>
    %297 = arith.truncf %295 : vector<8x128xf32> to vector<8x128xbf16>
    %298 = arith.index_cast %c5_i32 : i32 to index
    %c0_109 = arith.constant 0 : index
    %c0_110 = arith.constant 0 : index
    %299 = vector.load %arg6[%298, %c0_109, %c0_110] : memref<8x8x128xbf16, #tpu.memory_space<vmem>>, vector<1x8x128xbf16>
    %300 = vector.shape_cast %299 : vector<1x8x128xbf16> to vector<8x128xbf16>
    %301 = vector.shape_cast %297 : vector<8x128xbf16> to vector<1x8x128xbf16>
    tpu.vector_store %arg6[%298, %c0_109, %c0_110], %301 {strides = array<i32>} : memref<8x8x128xbf16, #tpu.memory_space<vmem>>, vector<1x8x128xbf16>,
    %c6_i32 = arith.constant 6 : i32
    %c8_i32_111 = arith.constant 8 : i32
    %302 = arith.muli %c6_i32, %c8_i32_111 : i32
    %303 = tpu.assume_multiple %302, 8 : i32
    %304 = arith.index_cast %303 : i32 to index
    %c0_112 = arith.constant 0 : index
    %305 = vector.load %arg9[%304, %c0_112] : memref<64x512xf32, #tpu.memory_space<vmem>>, vector<8x512xf32>
    %306 = arith.truncf %295 : vector<8x128xf32> to vector<8x128xbf16>
    %cst_113 = arith.constant dense<0.000000e+00> : vector<8x512xf32>
    %307 = tpu.matmul %306, %11, %cst_113 {dimension_numbers = #tpu.dot_dimension_numbers<[1], [0], [0], [1], [0, 0, 1, 1], [], []>} : vector<8x128xbf16>, vector<128x512xbf16>, vector<8x512xf32> -> vector<8x512xf32>
    %308 = arith.addf %305, %307 : vector<8x512xf32>
    %309 = vector.extract_strided_slice %308 {offsets = [0, 0], sizes = [8, 128], strides = [1, 1]} : vector<8x512xf32> to vector<8x128xf32>
    %cst_114 = arith.constant 5.000000e-01 : f32
    %310 = vector.broadcast %cst_114 : f32 to vector<8x128xf32>
    %311 = arith.mulf %310, %309 : vector<8x128xf32>
    %312 = math.tanh %311 : vector<8x128xf32>
    %cst_115 = arith.constant 1.000000e+00 : f32
    %313 = vector.broadcast %cst_115 : f32 to vector<8x128xf32>
    %314 = arith.addf %312, %313 : vector<8x128xf32>
    %cst_116 = arith.constant 5.000000e-01 : f32
    %315 = vector.broadcast %cst_116 : f32 to vector<8x128xf32>
    %316 = arith.mulf %315, %314 : vector<8x128xf32>
    %317 = vector.extract_strided_slice %308 {offsets = [0, 128], sizes = [8, 128], strides = [1, 1]} : vector<8x512xf32> to vector<8x128xf32>
    %cst_117 = arith.constant 5.000000e-01 : f32
    %318 = vector.broadcast %cst_117 : f32 to vector<8x128xf32>
    %319 = arith.mulf %318, %317 : vector<8x128xf32>
    %320 = math.tanh %319 : vector<8x128xf32>
    %cst_118 = arith.constant 1.000000e+00 : f32
    %321 = vector.broadcast %cst_118 : f32 to vector<8x128xf32>
    %322 = arith.addf %320, %321 : vector<8x128xf32>
    %cst_119 = arith.constant 5.000000e-01 : f32
    %323 = vector.broadcast %cst_119 : f32 to vector<8x128xf32>
    %324 = arith.mulf %323, %322 : vector<8x128xf32>
    %325 = vector.extract_strided_slice %308 {offsets = [0, 256], sizes = [8, 128], strides = [1, 1]} : vector<8x512xf32> to vector<8x128xf32>
    %326 = math.tanh %325 : vector<8x128xf32>
    %327 = vector.extract_strided_slice %308 {offsets = [0, 384], sizes = [8, 128], strides = [1, 1]} : vector<8x512xf32> to vector<8x128xf32>
    %cst_120 = arith.constant 5.000000e-01 : f32
    %328 = vector.broadcast %cst_120 : f32 to vector<8x128xf32>
    %329 = arith.mulf %328, %327 : vector<8x128xf32>
    %330 = math.tanh %329 : vector<8x128xf32>
    %cst_121 = arith.constant 1.000000e+00 : f32
    %331 = vector.broadcast %cst_121 : f32 to vector<8x128xf32>
    %332 = arith.addf %330, %331 : vector<8x128xf32>
    %cst_122 = arith.constant 5.000000e-01 : f32
    %333 = vector.broadcast %cst_122 : f32 to vector<8x128xf32>
    %334 = arith.mulf %333, %332 : vector<8x128xf32>
    %335 = arith.mulf %324, %296 : vector<8x128xf32>
    %336 = arith.mulf %316, %326 : vector<8x128xf32>
    %337 = arith.addf %335, %336 : vector<8x128xf32>
    %338 = math.tanh %337 : vector<8x128xf32>
    %339 = arith.mulf %334, %338 : vector<8x128xf32>
    %c8_i32_123 = arith.constant 8 : i32
    %340 = arith.muli %arg1, %c8_i32_123 : i32
    %341 = arith.addi %340, %c6_i32 : i32
    %c8_i32_124 = arith.constant 8 : i32
    %342 = arith.cmpi slt, %341, %c8_i32_124 : i32
    %343 = arith.select %342, %339, %295 : vector<8x128xf32>
    %344 = arith.select %342, %337, %296 : vector<8x128xf32>
    %345 = arith.truncf %343 : vector<8x128xf32> to vector<8x128xbf16>
    %346 = arith.index_cast %c6_i32 : i32 to index
    %c0_125 = arith.constant 0 : index
    %c0_126 = arith.constant 0 : index
    %347 = vector.load %arg6[%346, %c0_125, %c0_126] : memref<8x8x128xbf16, #tpu.memory_space<vmem>>, vector<1x8x128xbf16>
    %348 = vector.shape_cast %347 : vector<1x8x128xbf16> to vector<8x128xbf16>
    %349 = vector.shape_cast %345 : vector<8x128xbf16> to vector<1x8x128xbf16>
    tpu.vector_store %arg6[%346, %c0_125, %c0_126], %349 {strides = array<i32>} : memref<8x8x128xbf16, #tpu.memory_space<vmem>>, vector<1x8x128xbf16>,
    %c7_i32 = arith.constant 7 : i32
    %c8_i32_127 = arith.constant 8 : i32
    %350 = arith.muli %c7_i32, %c8_i32_127 : i32
    %351 = tpu.assume_multiple %350, 8 : i32
    %352 = arith.index_cast %351 : i32 to index
    %c0_128 = arith.constant 0 : index
    %353 = vector.load %arg9[%352, %c0_128] : memref<64x512xf32, #tpu.memory_space<vmem>>, vector<8x512xf32>
    %354 = arith.truncf %343 : vector<8x128xf32> to vector<8x128xbf16>
    %cst_129 = arith.constant dense<0.000000e+00> : vector<8x512xf32>
    %355 = tpu.matmul %354, %11, %cst_129 {dimension_numbers = #tpu.dot_dimension_numbers<[1], [0], [0], [1], [0, 0, 1, 1], [], []>} : vector<8x128xbf16>, vector<128x512xbf16>, vector<8x512xf32> -> vector<8x512xf32>
    %356 = arith.addf %353, %355 : vector<8x512xf32>
    %357 = vector.extract_strided_slice %356 {offsets = [0, 0], sizes = [8, 128], strides = [1, 1]} : vector<8x512xf32> to vector<8x128xf32>
    %cst_130 = arith.constant 5.000000e-01 : f32
    %358 = vector.broadcast %cst_130 : f32 to vector<8x128xf32>
    %359 = arith.mulf %358, %357 : vector<8x128xf32>
    %360 = math.tanh %359 : vector<8x128xf32>
    %cst_131 = arith.constant 1.000000e+00 : f32
    %361 = vector.broadcast %cst_131 : f32 to vector<8x128xf32>
    %362 = arith.addf %360, %361 : vector<8x128xf32>
    %cst_132 = arith.constant 5.000000e-01 : f32
    %363 = vector.broadcast %cst_132 : f32 to vector<8x128xf32>
    %364 = arith.mulf %363, %362 : vector<8x128xf32>
    %365 = vector.extract_strided_slice %356 {offsets = [0, 128], sizes = [8, 128], strides = [1, 1]} : vector<8x512xf32> to vector<8x128xf32>
    %cst_133 = arith.constant 5.000000e-01 : f32
    %366 = vector.broadcast %cst_133 : f32 to vector<8x128xf32>
    %367 = arith.mulf %366, %365 : vector<8x128xf32>
    %368 = math.tanh %367 : vector<8x128xf32>
    %cst_134 = arith.constant 1.000000e+00 : f32
    %369 = vector.broadcast %cst_134 : f32 to vector<8x128xf32>
    %370 = arith.addf %368, %369 : vector<8x128xf32>
    %cst_135 = arith.constant 5.000000e-01 : f32
    %371 = vector.broadcast %cst_135 : f32 to vector<8x128xf32>
    %372 = arith.mulf %371, %370 : vector<8x128xf32>
    %373 = vector.extract_strided_slice %356 {offsets = [0, 256], sizes = [8, 128], strides = [1, 1]} : vector<8x512xf32> to vector<8x128xf32>
    %374 = math.tanh %373 : vector<8x128xf32>
    %375 = vector.extract_strided_slice %356 {offsets = [0, 384], sizes = [8, 128], strides = [1, 1]} : vector<8x512xf32> to vector<8x128xf32>
    %cst_136 = arith.constant 5.000000e-01 : f32
    %376 = vector.broadcast %cst_136 : f32 to vector<8x128xf32>
    %377 = arith.mulf %376, %375 : vector<8x128xf32>
    %378 = math.tanh %377 : vector<8x128xf32>
    %cst_137 = arith.constant 1.000000e+00 : f32
    %379 = vector.broadcast %cst_137 : f32 to vector<8x128xf32>
    %380 = arith.addf %378, %379 : vector<8x128xf32>
    %cst_138 = arith.constant 5.000000e-01 : f32
    %381 = vector.broadcast %cst_138 : f32 to vector<8x128xf32>
    %382 = arith.mulf %381, %380 : vector<8x128xf32>
    %383 = arith.mulf %372, %344 : vector<8x128xf32>
    %384 = arith.mulf %364, %374 : vector<8x128xf32>
    %385 = arith.addf %383, %384 : vector<8x128xf32>
    %386 = math.tanh %385 : vector<8x128xf32>
    %387 = arith.mulf %382, %386 : vector<8x128xf32>
    %c8_i32_139 = arith.constant 8 : i32
    %388 = arith.muli %arg1, %c8_i32_139 : i32
    %389 = arith.addi %388, %c7_i32 : i32
    %c8_i32_140 = arith.constant 8 : i32
    %390 = arith.cmpi slt, %389, %c8_i32_140 : i32
    %391 = arith.select %390, %387, %343 : vector<8x128xf32>
    %392 = arith.select %390, %385, %344 : vector<8x128xf32>
    %393 = arith.truncf %391 : vector<8x128xf32> to vector<8x128xbf16>
    %394 = arith.index_cast %c7_i32 : i32 to index
    %c0_141 = arith.constant 0 : index
    %c0_142 = arith.constant 0 : index
    %395 = vector.load %arg6[%394, %c0_141, %c0_142] : memref<8x8x128xbf16, #tpu.memory_space<vmem>>, vector<1x8x128xbf16>
    %396 = vector.shape_cast %395 : vector<1x8x128xbf16> to vector<8x128xbf16>
    %397 = vector.shape_cast %393 : vector<8x128xbf16> to vector<1x8x128xbf16>
    tpu.vector_store %arg6[%394, %c0_141, %c0_142], %397 {strides = array<i32>} : memref<8x8x128xbf16, #tpu.memory_space<vmem>>, vector<1x8x128xbf16>,
    %c8_i32_143 = arith.constant 8 : i32
    %c0_144 = arith.constant 0 : index
    %c0_145 = arith.constant 0 : index
    %398 = vector.load %arg10[%c0_144, %c0_145] : memref<8x128xf32, #tpu.memory_space<vmem>>, vector<8x128xf32>
    tpu.vector_store %arg10[%c0_144, %c0_145], %391 {strides = array<i32>} : memref<8x128xf32, #tpu.memory_space<vmem>>, vector<8x128xf32>,
    %c0_146 = arith.constant 0 : index
    %c0_147 = arith.constant 0 : index
    %399 = vector.load %arg11[%c0_146, %c0_147] : memref<8x128xf32, #tpu.memory_space<vmem>>, vector<8x128xf32>
    tpu.vector_store %arg11[%c0_146, %c0_147], %392 {strides = array<i32>} : memref<8x128xf32, #tpu.memory_space<vmem>>, vector<8x128xf32>,
    %c0_i32_148 = arith.constant 0 : i32
    %400 = arith.cmpi eq, %arg1, %c0_i32_148 : i32
    %401 = arith.extui %400 : i1 to i32
    %c0_i32_149 = arith.constant 0 : i32
    %402 = arith.cmpi ne, %401, %c0_i32_149 : i32
    scf.if %402 {
      %c0_150 = arith.constant 0 : index
      %c0_151 = arith.constant 0 : index
      %403 = vector.load %arg7[%c0_150, %c0_151] : memref<8x128xf32, #tpu.memory_space<vmem>>, vector<8x128xf32>
      tpu.vector_store %arg7[%c0_150, %c0_151], %391 {strides = array<i32>} : memref<8x128xf32, #tpu.memory_space<vmem>>, vector<8x128xf32>,
      %c0_152 = arith.constant 0 : index
      %c0_153 = arith.constant 0 : index
      %404 = vector.load %arg8[%c0_152, %c0_153] : memref<8x128xf32, #tpu.memory_space<vmem>>, vector<8x128xf32>
      tpu.vector_store %arg8[%c0_152, %c0_153], %392 {strides = array<i32>} : memref<8x128xf32, #tpu.memory_space<vmem>>, vector<8x128xf32>,
    } else {
    }
    return
  }
  func.func @transform_0(%arg0: i32, %arg1: i32) -> (i32, i32, i32) {
    %c0_i32 = arith.constant 0 : i32
    %c0_i32_0 = arith.constant 0 : i32
    return %arg1, %arg0, %c0_i32 : i32, i32, i32
  }
  func.func @transform_1(%arg0: i32, %arg1: i32) -> (i32, i32) {
    %c0_i32 = arith.constant 0 : i32
    %c0_i32_0 = arith.constant 0 : i32
    %c0_i32_1 = arith.constant 0 : i32
    return %c0_i32, %c0_i32_0 : i32, i32
  }
  func.func @transform_2(%arg0: i32, %arg1: i32) -> (i32, i32) {
    %c0_i32 = arith.constant 0 : i32
    %c0_i32_0 = arith.constant 0 : i32
    %c0_i32_1 = arith.constant 0 : i32
    return %c0_i32, %c0_i32_0 : i32, i32
  }
  func.func @transform_3(%arg0: i32, %arg1: i32) -> (i32, i32) {
    %c0_i32 = arith.constant 0 : i32
    %c0_i32_0 = arith.constant 0 : i32
    %c0_i32_1 = arith.constant 0 : i32
    return %c0_i32, %c0_i32_0 : i32, i32
  }
  func.func @transform_4(%arg0: i32, %arg1: i32) -> (i32, i32, i32) {
    %c0_i32 = arith.constant 0 : i32
    %c0_i32_0 = arith.constant 0 : i32
    return %arg1, %arg0, %c0_i32 : i32, i32, i32
  }
  func.func @transform_5(%arg0: i32, %arg1: i32) -> (i32, i32) {
    %c0_i32 = arith.constant 0 : i32
    %c0_i32_0 = arith.constant 0 : i32
    return %arg0, %c0_i32 : i32, i32
  }
  func.func @transform_6(%arg0: i32, %arg1: i32) -> (i32, i32) {
    %c0_i32 = arith.constant 0 : i32
    %c0_i32_0 = arith.constant 0 : i32
    return %arg0, %c0_i32 : i32, i32
  }
}

</mosaic_0001>

<llo_original>
// kernel: tpu_custom_call.1
$region0: #{tpu_custom_call.1}
  #allocation0 [shape = 'u32[]', space=smem, size = 0x4, offset = 0x4, fixed_abs, tag = 'smem constant byte address 0x4 - core index']
  #allocation1 [shape = 'u32[144,128]{1,0:T(1,128)}', space=vmem, size = 0x12000, scoped, tag = 'internal scratch']
  #allocation2 [shape = 'f32[64,512]{1,0:T(8,128)}', space=vmem, size = 0x20000, scoped, tag = 'scratch operand']
  #allocation3 [shape = 'f32[8,128]{1,0:T(8,128)}', space=vmem, size = 0x1000, scoped, tag = 'scratch operand']
  #allocation4 [shape = 'f32[8,128]{1,0:T(8,128)}', space=vmem, size = 0x1000, scoped, tag = 'scratch operand']
  %s0 = inlined_call_operand.hbm [shape: bf16[8,8,16], index: 0, kind: input, shape index: {}]
  %s1 = inlined_call_operand.hbm [shape: bf16[16,512], index: 1, kind: input, shape index: {}]
  %s2 = inlined_call_operand.hbm [shape: bf16[128,512], index: 2, kind: input, shape index: {}]
  %s3 = inlined_call_operand.vmem [shape: f32[1,512], index: 3, kind: input, shape index: {}]
  %s4 = inlined_call_operand.hbm [shape: bf16[8,8,128], index: 4, kind: output, shape index: {0}]
  %s5 = inlined_call_operand.hbm [shape: f32[8,128], index: 5, kind: output, shape index: {1}]
  %s6 = inlined_call_operand.hbm [shape: f32[8,128], index: 6, kind: output, shape index: {2}]
  %7 = xla_tuple %s4, %s5, %s6
  %s8 = sld [smem:[#allocation0]]
  $region62: #{tpu_custom_call.1} parent=0
    _
  %s10 = ssub.s32 1, %s8
  %s11 = scalar_select 0, %s10, %s8
  $region1: #{tpu_custom_call.1} parent=0
    #allocation5 [shape = 'u8[16384]{0}', space=vmem, size = 0x4000, scoped, tag = 'input window, operand 0, single buffered']
    #allocation6 [shape = 's32[1]{0}', space=sflag, size = 0x4, scoped, tag = 'scoped memory for tpu_custom_call.1']
    #allocation7 [shape = 's32[1]{0}', space=sflag, size = 0x4, scoped, tag = 'scoped memory for tpu_custom_call.1']
    #allocation8 [shape = 'u8[16384]{0}', space=vmem, size = 0x4000, scoped, tag = 'input window, operand 1, single buffered']
    #allocation9 [shape = 's32[1]{0}', space=sflag, size = 0x4, scoped, tag = 'scoped memory for tpu_custom_call.1']
    #allocation10 [shape = 'u8[131072]{0}', space=vmem, size = 0x20000, scoped, tag = 'input window, operand 2, single buffered']
    #allocation11 [shape = 'u8[16384]{0}', space=vmem, size = 0x4000, scoped, tag = 'output window, operand 0, single buffered']
    #allocation12 [shape = 'u8[4096]{0}', space=vmem, size = 0x1000, scoped, tag = 'output window, operand 1, single buffered']
    #allocation13 [shape = 's32[1]{0}', space=sflag, size = 0x4, scoped, tag = 'scoped memory for tpu_custom_call.1']
    #allocation14 [shape = 'u8[4096]{0}', space=vmem, size = 0x1000, scoped, tag = 'output window, operand 2, single buffered']
    %12 = vsyncpa [#allocation6], 0
    %13 = vsyncpa [#allocation9], 0
    %14 = vsyncpa [#allocation7], 0
    %15 = vsyncpa [#allocation13], 0
    // Predicated region
    $region2: #{tpu_custom_call.1} parent=1 // pred_check
      _
    $region3: #{tpu_custom_call.1} parent=1 // pred_check_branch
      %17 = sbr.rel (0) target = $region5
    $region4: #{tpu_custom_call.1} parent=1 // pred_region
      %s19 = ssub.s32 512, 512
      %20 = vsyncadd [#allocation6], %s19
      %s21 = sshll.u32 [#allocation5], 4
      %s22 = int_to_ptr.vmem [resolvable:$true] %s21
      %27 = dma.hbm_to_vmem [thread:$0]  %s0, 512, %s22, [#allocation6], 64, 64, 4
    $region5: #{tpu_custom_call.1} parent=1 // pred_fallthru
      _
    // Predicated region
    $region6: #{tpu_custom_call.1} parent=1 // pred_check
      _
    $region7: #{tpu_custom_call.1} parent=1 // pred_check_branch
      %29 = sbr.rel (0) target = $region9
    $region8: #{tpu_custom_call.1} parent=1 // pred_region
      %s31 = ssub.s32 512, 512
      %32 = vsyncadd [#allocation9], %s31
      %s33 = sshll.u32 [#allocation8], 4
      %s34 = int_to_ptr.vmem [resolvable:$true] %s33
      %39 = dma.hbm_to_vmem [thread:$0]  %s1, 512, %s34, [#allocation9], 256, 256, 16
    $region9: #{tpu_custom_call.1} parent=1 // pred_fallthru
      _
    // Predicated region
    $region10: #{tpu_custom_call.1} parent=1 // pred_check
      _
    $region11: #{tpu_custom_call.1} parent=1 // pred_check_branch
      %41 = sbr.rel (0) target = $region13
    $region12: #{tpu_custom_call.1} parent=1 // pred_region
      %s43 = ssub.s32 4096, 4096
      %44 = vsyncadd [#allocation9], %s43
      %s45 = sshll.u32 [#allocation10], 4
      %s46 = int_to_ptr.vmem [resolvable:$true] %s45
      %51 = dma.hbm_to_vmem [thread:$0]  %s2, 4096, %s46, [#allocation9], 256, 256, 16
    $region13: #{tpu_custom_call.1} parent=1 // pred_fallthru
      _
    // Predicated region
    $region14: #{tpu_custom_call.1} parent=1 // pred_check
      _
    $region15: #{tpu_custom_call.1} parent=1 // pred_check_branch
      %53 = sbr.rel (0) target = $region17
    $region16: #{tpu_custom_call.1} parent=1 // pred_region
      _
    $region17: #{tpu_custom_call.1} parent=1 // pred_fallthru
      _
    // Predicated region
    $region18: #{tpu_custom_call.1} parent=1 // pred_check
      _
    $region19: #{tpu_custom_call.1} parent=1 // pred_check_branch
      %55 = sbr.rel (0) target = $region21
    $region20: #{tpu_custom_call.1} parent=1 // pred_region
      %56 = dma.done [#allocation6], 512
    $region21: #{tpu_custom_call.1} parent=1 // pred_fallthru
      _
    // Predicated region
    $region22: #{tpu_custom_call.1} parent=1 // pred_check
      _
    $region23: #{tpu_custom_call.1} parent=1 // pred_check_branch
      %58 = sbr.rel (0) target = $region25
    $region24: #{tpu_custom_call.1} parent=1 // pred_region
      %59 = dma.done [#allocation9], 512
    $region25: #{tpu_custom_call.1} parent=1 // pred_fallthru
      _
    // Predicated region
    $region26: #{tpu_custom_call.1} parent=1 // pred_check
      _
    $region27: #{tpu_custom_call.1} parent=1 // pred_check_branch
      %61 = sbr.rel (0) target = $region29
    $region28: #{tpu_custom_call.1} parent=1 // pred_region
      %62 = dma.done [#allocation9], 4096
    $region29: #{tpu_custom_call.1} parent=1 // pred_fallthru
      _
    %p64 = scmp.eq.s32.totalorder 0, 0
    // Predicated region
    $region30: #{tpu_custom_call.1} parent=1 // pred_check
      %p65 = pneg %p64
    $region31: #{tpu_custom_call.1} parent=1 // pred_check_branch
      %67 = sbr.rel (%p65) target = $region33
    $region32: #{tpu_custom_call.1} parent=1 // pred_region
      %68 = vst [vmem:[#allocation3] sm:$0xff] 0.0
      %69 = vst [vmem:[#allocation4] sm:$0xff] 0.0
    $region33: #{tpu_custom_call.1} parent=1 // pred_fallthru
      _
    %v70 = vld [vmem:[#allocation5] sm:$0xf]
    %v71 = vld [vmem:[#allocation5 + $0x4] sm:$0xf]
    %v72 = vld [vmem:[#allocation5 + $0x8] sm:$0xf]
    %v73 = vld [vmem:[#allocation5 + $0xc] sm:$0xf]
    %v74 = vld [vmem:[#allocation5 + $0x10] sm:$0xf]
    %v75 = vld [vmem:[#allocation5 + $0x14] sm:$0xf]
    %v76 = vld [vmem:[#allocation5 + $0x18] sm:$0xf]
    %v77 = vld [vmem:[#allocation5 + $0x1c] sm:$0xf]
    %v78 = vld [vmem:[#allocation8] sm:$0xff]
    %v79 = vld [vmem:[#allocation8 + $0x8] sm:$0xff]
    %v80 = vld [vmem:[#allocation8 + $0x10] sm:$0xff]
    %v81 = vld [vmem:[#allocation8 + $0x18] sm:$0xff]
    %v82 = vld [vmem:[%s3] sm:$0xf]
    %v84 = vlaneseq
    %v85 = vshrl.u32 %v84, 7
    %v86 = vsub.s32 0, %v85
    %v87 = vrot.slane %v82, %v86
    %v88 = vlaneseq
    %v89 = vshrl.u32 %v88, 7
    %v90 = vsub.s32 1, %v89
    %v91 = vrot.slane %v82, %v90
    %v92 = vlaneseq
    %v93 = vshrl.u32 %v92, 7
    %v94 = vsub.s32 2, %v93
    %v95 = vrot.slane %v82, %v94
    %v96 = vlaneseq
    %v97 = vshrl.u32 %v96, 7
    %v98 = vsub.s32 3, %v97
    %v99 = vrot.slane %v82, %v98
    %v112 = vunpack.c.l.b16 %v70
    %v113 = vunpack.c.l.b16 %v71
    %v114 = vunpack.c.l.b16 %v72
    %v115 = vunpack.c.l.b16 %v73
    %v116 = vunpack.c.l.b16 %v74
    %v117 = vunpack.c.l.b16 %v75
    %v118 = vunpack.c.l.b16 %v76
    %v119 = vunpack.c.l.b16 %v77
    %v120 = vpack.c.b16 %v113, %v112
    %v121 = vpack.c.b16 %v115, %v114
    %v122 = vpack.c.b16 %v117, %v116
    %v123 = vpack.c.b16 %v119, %v118
    %v128 = vunpack.c.l.b16 %v78
    %v129 = vunpack.c.h.b16 %v78
    %v130 = vunpack.c.l.b16 %v79
    %v131 = vunpack.c.h.b16 %v79
    %v132 = vunpack.c.l.b16 %v80
    %v133 = vunpack.c.h.b16 %v80
    %v134 = vunpack.c.l.b16 %v81
    %v135 = vunpack.c.h.b16 %v81
    %v136 = vpack.c.b16 %v132, %v128
    %v137 = vpack.c.b16 %v133, %v129
    %v138 = vpack.c.b16 %v134, %v130
    %v139 = vpack.c.b16 %v135, %v131
    %vm144 = vcmask 130048
    %v146 = vsel %vm144, %v120, 0
    %v149 = vsel %vm144, %v121, 0
    %v152 = vsel %vm144, %v122, 0
    %v155 = vsel %vm144, %v123, 0
    %157 = vmatprep.subr.bf16.mxu0 %v137
    %158 = vmatpush1.bf16.msra.mxu0 %v136
    %159 = vmatprep.subr.bf16.mxu0 0
    %160 = vmatpush1.bf16.msra.mxu0 0
    %161 = vmatprep.subr.bf16.mxu0 0
    %162 = vmatpush1.bf16.msra.mxu0 0
    %163 = vmatprep.subr.bf16.mxu0 0
    %164 = vmatpush1.bf16.msra.mxu0 0
    %165 = vmatprep.subr.bf16.mxu0 0
    %166 = vmatpush1.bf16.msra.mxu0 0
    %167 = vmatprep.subr.bf16.mxu0 0
    %168 = vmatpush1.bf16.msra.mxu0 0
    %169 = vmatprep.subr.bf16.mxu0 0
    %170 = vmatpush1.bf16.msra.mxu0 0
    %171 = vmatprep.subr.bf16.mxu0 0
    %172 = vmatpush1.bf16.msra.mxu0 0
    %173 = vmatprep.subr.bf16.mxu0 0
    %174 = vmatpush1.bf16.msra.mxu0 0
    %175 = vmatprep.subr.bf16.mxu0 0
    %176 = vmatpush1.bf16.msra.mxu0 0
    %177 = vmatprep.subr.bf16.mxu0 0
    %178 = vmatpush1.bf16.msra.mxu0 0
    %179 = vmatprep.subr.bf16.mxu0 0
    %180 = vmatpush1.bf16.msra.mxu0 0
    %181 = vmatprep.subr.bf16.mxu0 0
    %182 = vmatpush1.bf16.msra.mxu0 0
    %183 = vmatprep.subr.bf16.mxu0 0
    %184 = vmatpush1.bf16.msra.mxu0 0
    %185 = vmatprep.subr.bf16.mxu0 0
    %186 = vmatpush1.bf16.msra.mxu0 0
    %187 = vmatprep.subr.bf16.mxu0 0
    %188 = vmatpush1.bf16.msra.mxu0 0
    %189 = vmatprep.mubr.bf16.mxu0 0
    %190 = vmatmul.mubr.bf16.gmra.mrb[0].mxu0 %v146
    %v191 = vpop.f32.mrb[0].mxu0
    %v192 = vadd.f32 %v87, %v191
    %v193 = vpop.f32.mrb[0].mxu0
    %v194 = vadd.f32 %v91, %v193
    %v195 = vpop.f32.mrb[0].mxu0
    %v196 = vadd.f32 %v87, %v195
    %v197 = vpop.f32.mrb[0].mxu0
    %v198 = vadd.f32 %v91, %v197
    %199 = vmatprep.mubr.bf16.mxu0 0
    %200 = vmatmul.mubr.bf16.gmra.mrb[0].mxu0 %v149
    %v201 = vpop.f32.mrb[0].mxu0
    %v202 = vadd.f32 %v87, %v201
    %v203 = vpop.f32.mrb[0].mxu0
    %v204 = vadd.f32 %v91, %v203
    %v205 = vpop.f32.mrb[0].mxu0
    %v206 = vadd.f32 %v87, %v205
    %v207 = vpop.f32.mrb[0].mxu0
    %v208 = vadd.f32 %v91, %v207
    %209 = vmatprep.mubr.bf16.mxu0 0
    %210 = vmatmul.mubr.bf16.gmra.mrb[0].mxu0 %v152
    %v211 = vpop.f32.mrb[0].mxu0
    %v212 = vadd.f32 %v87, %v211
    %v213 = vpop.f32.mrb[0].mxu0
    %v214 = vadd.f32 %v91, %v213
    %v215 = vpop.f32.mrb[0].mxu0
    %v216 = vadd.f32 %v87, %v215
    %v217 = vpop.f32.mrb[0].mxu0
    %v218 = vadd.f32 %v91, %v217
    %219 = vmatprep.mubr.bf16.mxu0 0
    %220 = vmatmul.mubr.bf16.gmra.mrb[0].mxu0 %v155
    %v221 = vpop.f32.mrb[0].mxu0
    %v222 = vadd.f32 %v87, %v221
    %v223 = vpop.f32.mrb[0].mxu0
    %v224 = vadd.f32 %v91, %v223
    %v225 = vpop.f32.mrb[0].mxu0
    %v226 = vadd.f32 %v87, %v225
    %v227 = vpop.f32.mrb[0].mxu0
    %v228 = vadd.f32 %v91, %v227
    %229 = vdwg.mxu0
    %230 = vmatprep.subr.bf16.mxu0 %v139
    %231 = vmatpush1.bf16.msra.mxu0 %v138
    %232 = vmatprep.subr.bf16.mxu0 0
    %233 = vmatpush1.bf16.msra.mxu0 0
    %234 = vmatprep.subr.bf16.mxu0 0
    %235 = vmatpush1.bf16.msra.mxu0 0
    %236 = vmatprep.subr.bf16.mxu0 0
    %237 = vmatpush1.bf16.msra.mxu0 0
    %238 = vmatprep.subr.bf16.mxu0 0
    %239 = vmatpush1.bf16.msra.mxu0 0
    %240 = vmatprep.subr.bf16.mxu0 0
    %241 = vmatpush1.bf16.msra.mxu0 0
    %242 = vmatprep.subr.bf16.mxu0 0
    %243 = vmatpush1.bf16.msra.mxu0 0
    %244 = vmatprep.subr.bf16.mxu0 0
    %245 = vmatpush1.bf16.msra.mxu0 0
    %246 = vmatprep.subr.bf16.mxu0 0
    %247 = vmatpush1.bf16.msra.mxu0 0
    %248 = vmatprep.subr.bf16.mxu0 0
    %249 = vmatpush1.bf16.msra.mxu0 0
    %250 = vmatprep.subr.bf16.mxu0 0
    %251 = vmatpush1.bf16.msra.mxu0 0
    %252 = vmatprep.subr.bf16.mxu0 0
    %253 = vmatpush1.bf16.msra.mxu0 0
    %254 = vmatprep.subr.bf16.mxu0 0
    %255 = vmatpush1.bf16.msra.mxu0 0
    %256 = vmatprep.subr.bf16.mxu0 0
    %257 = vmatpush1.bf16.msra.mxu0 0
    %258 = vmatprep.subr.bf16.mxu0 0
    %259 = vmatpush1.bf16.msra.mxu0 0
    %260 = vmatprep.subr.bf16.mxu0 0
    %261 = vmatpush1.bf16.msra.mxu0 0
    %262 = vmatprep.mubr.bf16.mxu0 0
    %263 = vmatmul.mubr.bf16.gmra.mrb[0].mxu0 %v146
    %v264 = vpop.f32.mrb[0].mxu0
    %v265 = vadd.f32 %v95, %v264
    %v266 = vpop.f32.mrb[0].mxu0
    %v267 = vadd.f32 %v99, %v266
    %v268 = vpop.f32.mrb[0].mxu0
    %v269 = vadd.f32 %v95, %v268
    %v270 = vpop.f32.mrb[0].mxu0
    %v271 = vadd.f32 %v99, %v270
    %272 = vmatprep.mubr.bf16.mxu0 0
    %273 = vmatmul.mubr.bf16.gmra.mrb[0].mxu0 %v149
    %v274 = vpop.f32.mrb[0].mxu0
    %v275 = vadd.f32 %v95, %v274
    %v276 = vpop.f32.mrb[0].mxu0
    %v277 = vadd.f32 %v99, %v276
    %v278 = vpop.f32.mrb[0].mxu0
    %v279 = vadd.f32 %v95, %v278
    %v280 = vpop.f32.mrb[0].mxu0
    %v281 = vadd.f32 %v99, %v280
    %282 = vmatprep.mubr.bf16.mxu0 0
    %283 = vmatmul.mubr.bf16.gmra.mrb[0].mxu0 %v152
    %v284 = vpop.f32.mrb[0].mxu0
    %v285 = vadd.f32 %v95, %v284
    %v286 = vpop.f32.mrb[0].mxu0
    %v287 = vadd.f32 %v99, %v286
    %v288 = vpop.f32.mrb[0].mxu0
    %v289 = vadd.f32 %v95, %v288
    %v290 = vpop.f32.mrb[0].mxu0
    %v291 = vadd.f32 %v99, %v290
    %292 = vmatprep.mubr.bf16.mxu0 0
    %293 = vmatmul.mubr.bf16.gmra.mrb[0].mxu0 %v155
    %v294 = vpop.f32.mrb[0].mxu0
    %v295 = vadd.f32 %v95, %v294
    %v296 = vpop.f32.mrb[0].mxu0
    %v297 = vadd.f32 %v99, %v296
    %v298 = vpop.f32.mrb[0].mxu0
    %v299 = vadd.f32 %v95, %v298
    %v300 = vpop.f32.mrb[0].mxu0
    %v301 = vadd.f32 %v99, %v300
    %302 = vdwg.mxu0
    %303 = vst [vmem:[#allocation2] sm:$0xff] %v192
    %304 = vst [vmem:[#allocation2 + $0x8] sm:$0xff] %v194
    %305 = vst [vmem:[#allocation2 + $0x10] sm:$0xff] %v265
    %306 = vst [vmem:[#allocation2 + $0x18] sm:$0xff] %v267
    %307 = vst [vmem:[#allocation2 + $0x20] sm:$0xff] %v196
    %308 = vst [vmem:[#allocation2 + $0x28] sm:$0xff] %v198
    %309 = vst [vmem:[#allocation2 + $0x30] sm:$0xff] %v269
    %310 = vst [vmem:[#allocation2 + $0x38] sm:$0xff] %v271
    %311 = vst [vmem:[#allocation2 + $0x40] sm:$0xff] %v202
    %312 = vst [vmem:[#allocation2 + $0x48] sm:$0xff] %v204
    %313 = vst [vmem:[#allocation2 + $0x50] sm:$0xff] %v275
    %314 = vst [vmem:[#allocation2 + $0x58] sm:$0xff] %v277
    %315 = vst [vmem:[#allocation2 + $0x60] sm:$0xff] %v206
    %316 = vst [vmem:[#allocation2 + $0x68] sm:$0xff] %v208
    %317 = vst [vmem:[#allocation2 + $0x70] sm:$0xff] %v279
    %318 = vst [vmem:[#allocation2 + $0x78] sm:$0xff] %v281
    %319 = vst [vmem:[#allocation2 + $0x80] sm:$0xff] %v212
    %320 = vst [vmem:[#allocation2 + $0x88] sm:$0xff] %v214
    %321 = vst [vmem:[#allocation2 + $0x90] sm:$0xff] %v285
    %322 = vst [vmem:[#allocation2 + $0x98] sm:$0xff] %v287
    %323 = vst [vmem:[#allocation2 + $0xa0] sm:$0xff] %v216
    %324 = vst [vmem:[#allocation2 + $0xa8] sm:$0xff] %v218
    %325 = vst [vmem:[#allocation2 + $0xb0] sm:$0xff] %v289
    %326 = vst [vmem:[#allocation2 + $0xb8] sm:$0xff] %v291
    %327 = vst [vmem:[#allocation2 + $0xc0] sm:$0xff] %v222
    %328 = vst [vmem:[#allocation2 + $0xc8] sm:$0xff] %v224
    %329 = vst [vmem:[#allocation2 + $0xd0] sm:$0xff] %v295
    %330 = vst [vmem:[#allocation2 + $0xd8] sm:$0xff] %v297
    %331 = vst [vmem:[#allocation2 + $0xe0] sm:$0xff] %v226
    %332 = vst [vmem:[#allocation2 + $0xe8] sm:$0xff] %v228
    %333 = vst [vmem:[#allocation2 + $0xf0] sm:$0xff] %v299
    %334 = vst [vmem:[#allocation2 + $0xf8] sm:$0xff] %v301
    %v335 = vld [vmem:[#allocation10] sm:$0xff]
    %v336 = vld [vmem:[#allocation10 + $0x8] sm:$0xff]
    %v337 = vld [vmem:[#allocation10 + $0x10] sm:$0xff]
    %v338 = vld [vmem:[#allocation10 + $0x18] sm:$0xff]
    %v339 = vld [vmem:[#allocation10 + $0x20] sm:$0xff]
    %v340 = vld [vmem:[#allocation10 + $0x28] sm:$0xff]
    %v341 = vld [vmem:[#allocation10 + $0x30] sm:$0xff]
    %v342 = vld [vmem:[#allocation10 + $0x38] sm:$0xff]
    %v343 = vld [vmem:[#allocation10 + $0x40] sm:$0xff]
    %v344 = vld [vmem:[#allocation10 + $0x48] sm:$0xff]
    %v345 = vld [vmem:[#allocation10 + $0x50] sm:$0xff]
    %v346 = vld [vmem:[#allocation10 + $0x58] sm:$0xff]
    %v347 = vld [vmem:[#allocation10 + $0x60] sm:$0xff]
    %v348 = vld [vmem:[#allocation10 + $0x68] sm:$0xff]
    %v349 = vld [vmem:[#allocation10 + $0x70] sm:$0xff]
    %v350 = vld [vmem:[#allocation10 + $0x78] sm:$0xff]
    %v351 = vld [vmem:[#allocation10 + $0x80] sm:$0xff]
    %v352 = vld [vmem:[#allocation10 + $0x88] sm:$0xff]
    %v353 = vld [vmem:[#allocation10 + $0x90] sm:$0xff]
    %v354 = vld [vmem:[#allocation10 + $0x98] sm:$0xff]
    %v355 = vld [vmem:[#allocation10 + $0xa0] sm:$0xff]
    %v356 = vld [vmem:[#allocation10 + $0xa8] sm:$0xff]
    %v357 = vld [vmem:[#allocation10 + $0xb0] sm:$0xff]
    %v358 = vld [vmem:[#allocation10 + $0xb8] sm:$0xff]
    %v359 = vld [vmem:[#allocation10 + $0xc0] sm:$0xff]
    %v360 = vld [vmem:[#allocation10 + $0xc8] sm:$0xff]
    %v361 = vld [vmem:[#allocation10 + $0xd0] sm:$0xff]
    %v362 = vld [vmem:[#allocation10 + $0xd8] sm:$0xff]
    %v363 = vld [vmem:[#allocation10 + $0xe0] sm:$0xff]
    %v364 = vld [vmem:[#allocation10 + $0xe8] sm:$0xff]
    %v365 = vld [vmem:[#allocation10 + $0xf0] sm:$0xff]
    %v366 = vld [vmem:[#allocation10 + $0xf8] sm:$0xff]
    %v367 = vld [vmem:[#allocation3] sm:$0xff]
    %v368 = vld [vmem:[#allocation4] sm:$0xff]
    %s369 = smul.u32 0, 4
    %s370 = smul.addr %s369, 8
    %s371 = scalar_lea.vmem [#allocation2], %s370
    %v372 = vld [vmem:[%s371] sm:$0xff]
    %v373 = vld [vmem:[%s371 + $0x8] sm:$0xff]
    %v374 = vld [vmem:[%s371 + $0x10] sm:$0xff]
    %v375 = vld [vmem:[%s371 + $0x18] sm:$0xff]
    %v376 = vpack.c.bf16 %v367, %v367
    %v409 = vunpack.c.l.b16 %v335
    %v410 = vunpack.c.h.b16 %v335
    %v411 = vunpack.c.l.b16 %v336
    %v412 = vunpack.c.h.b16 %v336
    %v413 = vunpack.c.l.b16 %v337
    %v414 = vunpack.c.h.b16 %v337
    %v415 = vunpack.c.l.b16 %v338
    %v416 = vunpack.c.h.b16 %v338
    %v417 = vunpack.c.l.b16 %v339
    %v418 = vunpack.c.h.b16 %v339
    %v419 = vunpack.c.l.b16 %v340
    %v420 = vunpack.c.h.b16 %v340
    %v421 = vunpack.c.l.b16 %v341
    %v422 = vunpack.c.h.b16 %v341
    %v423 = vunpack.c.l.b16 %v342
    %v424 = vunpack.c.h.b16 %v342
    %v425 = vunpack.c.l.b16 %v343
    %v426 = vunpack.c.h.b16 %v343
    %v427 = vunpack.c.l.b16 %v344
    %v428 = vunpack.c.h.b16 %v344
    %v429 = vunpack.c.l.b16 %v345
    %v430 = vunpack.c.h.b16 %v345
    %v431 = vunpack.c.l.b16 %v346
    %v432 = vunpack.c.h.b16 %v346
    %v433 = vunpack.c.l.b16 %v347
    %v434 = vunpack.c.h.b16 %v347
    %v435 = vunpack.c.l.b16 %v348
    %v436 = vunpack.c.h.b16 %v348
    %v437 = vunpack.c.l.b16 %v349
    %v438 = vunpack.c.h.b16 %v349
    %v439 = vunpack.c.l.b16 %v350
    %v440 = vunpack.c.h.b16 %v350
    %v441 = vunpack.c.l.b16 %v351
    %v442 = vunpack.c.h.b16 %v351
    %v443 = vunpack.c.l.b16 %v352
    %v444 = vunpack.c.h.b16 %v352
    %v445 = vunpack.c.l.b16 %v353
    %v446 = vunpack.c.h.b16 %v353
    %v447 = vunpack.c.l.b16 %v354
    %v448 = vunpack.c.h.b16 %v354
    %v449 = vunpack.c.l.b16 %v355
    %v450 = vunpack.c.h.b16 %v355
    %v451 = vunpack.c.l.b16 %v356
    %v452 = vunpack.c.h.b16 %v356
    %v453 = vunpack.c.l.b16 %v357
    %v454 = vunpack.c.h.b16 %v357
    %v455 = vunpack.c.l.b16 %v358
    %v456 = vunpack.c.h.b16 %v358
    %v457 = vunpack.c.l.b16 %v359
    %v458 = vunpack.c.h.b16 %v359
    %v459 = vunpack.c.l.b16 %v360
    %v460 = vunpack.c.h.b16 %v360
    %v461 = vunpack.c.l.b16 %v361
    %v462 = vunpack.c.h.b16 %v361
    %v463 = vunpack.c.l.b16 %v362
    %v464 = vunpack.c.h.b16 %v362
    %v465 = vunpack.c.l.b16 %v363
    %v466 = vunpack.c.h.b16 %v363
    %v467 = vunpack.c.l.b16 %v364
    %v468 = vunpack.c.h.b16 %v364
    %v469 = vunpack.c.l.b16 %v365
    %v470 = vunpack.c.h.b16 %v365
    %v471 = vunpack.c.l.b16 %v366
    %v472 = vunpack.c.h.b16 %v366
    %v473 = vpack.c.b16 %v413, %v409
    %v474 = vpack.c.b16 %v414, %v410
    %v475 = vpack.c.b16 %v415, %v411
    %v476 = vpack.c.b16 %v416, %v412
    %v477 = vpack.c.b16 %v421, %v417
    %v478 = vpack.c.b16 %v422, %v418
    %v479 = vpack.c.b16 %v423, %v419
    %v480 = vpack.c.b16 %v424, %v420
    %v481 = vpack.c.b16 %v429, %v425
    %v482 = vpack.c.b16 %v430, %v426
    %v483 = vpack.c.b16 %v431, %v427
    %v484 = vpack.c.b16 %v432, %v428
    %v485 = vpack.c.b16 %v437, %v433
    %v486 = vpack.c.b16 %v438, %v434
    %v487 = vpack.c.b16 %v439, %v435
    %v488 = vpack.c.b16 %v440, %v436
    %v489 = vpack.c.b16 %v445, %v441
    %v490 = vpack.c.b16 %v446, %v442
    %v491 = vpack.c.b16 %v447, %v443
    %v492 = vpack.c.b16 %v448, %v444
    %v493 = vpack.c.b16 %v453, %v449
    %v494 = vpack.c.b16 %v454, %v450
    %v495 = vpack.c.b16 %v455, %v451
    %v496 = vpack.c.b16 %v456, %v452
    %v497 = vpack.c.b16 %v461, %v457
    %v498 = vpack.c.b16 %v462, %v458
    %v499 = vpack.c.b16 %v463, %v459
    %v500 = vpack.c.b16 %v464, %v460
    %v501 = vpack.c.b16 %v469, %v465
    %v502 = vpack.c.b16 %v470, %v466
    %v503 = vpack.c.b16 %v471, %v467
    %v504 = vpack.c.b16 %v472, %v468
    %537 = vmatprep.subr.bf16.mxu0 %v474
    %538 = vmatpush1.bf16.msra.mxu0 %v473
    %539 = vmatprep.subr.bf16.mxu0 %v478
    %540 = vmatpush1.bf16.msra.mxu0 %v477
    %541 = vmatprep.subr.bf16.mxu0 %v482
    %542 = vmatpush1.bf16.msra.mxu0 %v481
    %543 = vmatprep.subr.bf16.mxu0 %v486
    %544 = vmatpush1.bf16.msra.mxu0 %v485
    %545 = vmatprep.subr.bf16.mxu0 %v490
    %546 = vmatpush1.bf16.msra.mxu0 %v489
    %547 = vmatprep.subr.bf16.mxu0 %v494
    %548 = vmatpush1.bf16.msra.mxu0 %v493
    %549 = vmatprep.subr.bf16.mxu0 %v498
    %550 = vmatpush1.bf16.msra.mxu0 %v497
    %551 = vmatprep.subr.bf16.mxu0 %v502
    %552 = vmatpush1.bf16.msra.mxu0 %v501
    %553 = vmatprep.subr.bf16.mxu0 0
    %554 = vmatpush1.bf16.msra.mxu0 0
    %555 = vmatprep.subr.bf16.mxu0 0
    %556 = vmatpush1.bf16.msra.mxu0 0
    %557 = vmatprep.subr.bf16.mxu0 0
    %558 = vmatpush1.bf16.msra.mxu0 0
    %559 = vmatprep.subr.bf16.mxu0 0
    %560 = vmatpush1.bf16.msra.mxu0 0
    %561 = vmatprep.subr.bf16.mxu0 0
    %562 = vmatpush1.bf16.msra.mxu0 0
    %563 = vmatprep.subr.bf16.mxu0 0
    %564 = vmatpush1.bf16.msra.mxu0 0
    %565 = vmatprep.subr.bf16.mxu0 0
    %566 = vmatpush1.bf16.msra.mxu0 0
    %567 = vmatprep.subr.bf16.mxu0 0
    %568 = vmatpush1.bf16.msra.mxu0 0
    %569 = vmatprep.mubr.bf16.mxu0 0
    %570 = vmatmul.mubr.bf16.gmra.mrb[0].mxu0 %v376
    %v571 = vpop.f32.mrb[0].mxu0
    %v572 = vadd.f32 0.0, %v571
    %v573 = vpop.f32.mrb[0].mxu0
    %v574 = vadd.f32 0.0, %v573
    %v575 = vpop.f32.mrb[0].mxu0
    %v576 = vpop.f32.mrb[0].mxu0
    %577 = vdwg.mxu0
    %578 = vmatprep.subr.bf16.mxu0 %v476
    %579 = vmatpush1.bf16.msra.mxu0 %v475
    %580 = vmatprep.subr.bf16.mxu0 %v480
    %581 = vmatpush1.bf16.msra.mxu0 %v479
    %582 = vmatprep.subr.bf16.mxu0 %v484
    %583 = vmatpush1.bf16.msra.mxu0 %v483
    %584 = vmatprep.subr.bf16.mxu0 %v488
    %585 = vmatpush1.bf16.msra.mxu0 %v487
    %586 = vmatprep.subr.bf16.mxu0 %v492
    %587 = vmatpush1.bf16.msra.mxu0 %v491
    %588 = vmatprep.subr.bf16.mxu0 %v496
    %589 = vmatpush1.bf16.msra.mxu0 %v495
    %590 = vmatprep.subr.bf16.mxu0 %v500
    %591 = vmatpush1.bf16.msra.mxu0 %v499
    %592 = vmatprep.subr.bf16.mxu0 %v504
    %593 = vmatpush1.bf16.msra.mxu0 %v503
    %594 = vmatprep.subr.bf16.mxu0 0
    %595 = vmatpush1.bf16.msra.mxu0 0
    %596 = vmatprep.subr.bf16.mxu0 0
    %597 = vmatpush1.bf16.msra.mxu0 0
    %598 = vmatprep.subr.bf16.mxu0 0
    %599 = vmatpush1.bf16.msra.mxu0 0
    %600 = vmatprep.subr.bf16.mxu0 0
    %601 = vmatpush1.bf16.msra.mxu0 0
    %602 = vmatprep.subr.bf16.mxu0 0
    %603 = vmatpush1.bf16.msra.mxu0 0
    %604 = vmatprep.subr.bf16.mxu0 0
    %605 = vmatpush1.bf16.msra.mxu0 0
    %606 = vmatprep.subr.bf16.mxu0 0
    %607 = vmatpush1.bf16.msra.mxu0 0
    %608 = vmatprep.subr.bf16.mxu0 0
    %609 = vmatpush1.bf16.msra.mxu0 0
    %610 = vmatprep.mubr.bf16.mxu0 0
    %611 = vmatmul.mubr.bf16.gmra.mrb[0].mxu0 %v376
    %v612 = vpop.f32.mrb[0].mxu0
    %v613 = vadd.f32 0.0, %v612
    %v614 = vpop.f32.mrb[0].mxu0
    %v615 = vadd.f32 0.0, %v614
    %v616 = vpop.f32.mrb[0].mxu0
    %v617 = vpop.f32.mrb[0].mxu0
    %618 = vdwg.mxu0
    %v619 = vadd.f32 %v372, %v572
    %v620 = vadd.f32 %v373, %v574
    %v621 = vadd.f32 %v374, %v613
    %v622 = vadd.f32 %v375, %v615
    %v623 = vmul.f32 %v619, 0.5
    %v624 = vtanh.pop %v623
    %v625 = vadd.f32 %v624, 1.0
    %v626 = vmul.f32 %v625, 0.5
    %v627 = vmul.f32 %v620, 0.5
    %v628 = vtanh.pop %v627
    %v629 = vadd.f32 %v628, 1.0
    %v630 = vmul.f32 %v629, 0.5
    %v631 = vtanh.pop %v621
    %v632 = vmul.f32 %v622, 0.5
    %v633 = vtanh.pop %v632
    %v634 = vadd.f32 %v633, 1.0
    %v635 = vmul.f32 %v634, 0.5
    %v636 = vmul.f32 %v630, %v368
    %v637 = vmul.f32 %v626, %v631
    %v638 = vadd.f32 %v636, %v637
    %v639 = vtanh.pop %v638
    %v640 = vmul.f32 %v635, %v639
    %s641 = smul.u32 0, 8
    %p642 = scmp.lt.s32.totalorder %s641, 8
    %s643 = scalar_select %p642, 1, 0
    %v644 = vstv %s643
    %vm645 = vcmp.eq.s32.totalorder %v644, 1
    %v646 = vsel %vm645, %v640, %v367
    %v647 = vsel %vm645, %v638, %v368
    %v648 = vpack.c.bf16 %v646, %v646
    %649 = vst [vmem:[#allocation11] sm:$0xf] %v648
    %s650 = smul.u32 1, 4
    %s651 = smul.addr %s650, 8
    %s652 = scalar_lea.vmem [#allocation2], %s651
    %v653 = vld [vmem:[%s652] sm:$0xff]
    %v654 = vld [vmem:[%s652 + $0x8] sm:$0xff]
    %v655 = vld [vmem:[%s652 + $0x10] sm:$0xff]
    %v656 = vld [vmem:[%s652 + $0x18] sm:$0xff]
    %657 = vmatprep.subr.bf16.mxu0 %v474
    %658 = vmatpush1.bf16.msra.mxu0 %v473
    %659 = vmatprep.subr.bf16.mxu0 %v478
    %660 = vmatpush1.bf16.msra.mxu0 %v477
    %661 = vmatprep.subr.bf16.mxu0 %v482
    %662 = vmatpush1.bf16.msra.mxu0 %v481
    %663 = vmatprep.subr.bf16.mxu0 %v486
    %664 = vmatpush1.bf16.msra.mxu0 %v485
    %665 = vmatprep.subr.bf16.mxu0 %v490
    %666 = vmatpush1.bf16.msra.mxu0 %v489
    %667 = vmatprep.subr.bf16.mxu0 %v494
    %668 = vmatpush1.bf16.msra.mxu0 %v493
    %669 = vmatprep.subr.bf16.mxu0 %v498
    %670 = vmatpush1.bf16.msra.mxu0 %v497
    %671 = vmatprep.subr.bf16.mxu0 %v502
    %672 = vmatpush1.bf16.msra.mxu0 %v501
    %673 = vmatprep.subr.bf16.mxu0 0
    %674 = vmatpush1.bf16.msra.mxu0 0
    %675 = vmatprep.subr.bf16.mxu0 0
    %676 = vmatpush1.bf16.msra.mxu0 0
    %677 = vmatprep.subr.bf16.mxu0 0
    %678 = vmatpush1.bf16.msra.mxu0 0
    %679 = vmatprep.subr.bf16.mxu0 0
    %680 = vmatpush1.bf16.msra.mxu0 0
    %681 = vmatprep.subr.bf16.mxu0 0
    %682 = vmatpush1.bf16.msra.mxu0 0
    %683 = vmatprep.subr.bf16.mxu0 0
    %684 = vmatpush1.bf16.msra.mxu0 0
    %685 = vmatprep.subr.bf16.mxu0 0
    %686 = vmatpush1.bf16.msra.mxu0 0
    %687 = vmatprep.subr.bf16.mxu0 0
    %688 = vmatpush1.bf16.msra.mxu0 0
    %689 = vmatprep.mubr.bf16.mxu0 0
    %690 = vmatmul.mubr.bf16.gmra.mrb[0].mxu0 %v648
    %v691 = vpop.f32.mrb[0].mxu0
    %v692 = vadd.f32 0.0, %v691
    %v693 = vpop.f32.mrb[0].mxu0
    %v694 = vadd.f32 0.0, %v693
    %v695 = vpop.f32.mrb[0].mxu0
    %v696 = vpop.f32.mrb[0].mxu0
    %697 = vdwg.mxu0
    %698 = vmatprep.subr.bf16.mxu0 %v476
    %699 = vmatpush1.bf16.msra.mxu0 %v475
    %700 = vmatprep.subr.bf16.mxu0 %v480
    %701 = vmatpush1.bf16.msra.mxu0 %v479
    %702 = vmatprep.subr.bf16.mxu0 %v484
    %703 = vmatpush1.bf16.msra.mxu0 %v483
    %704 = vmatprep.subr.bf16.mxu0 %v488
    %705 = vmatpush1.bf16.msra.mxu0 %v487
    %706 = vmatprep.subr.bf16.mxu0 %v492
    %707 = vmatpush1.bf16.msra.mxu0 %v491
    %708 = vmatprep.subr.bf16.mxu0 %v496
    %709 = vmatpush1.bf16.msra.mxu0 %v495
    %710 = vmatprep.subr.bf16.mxu0 %v500
    %711 = vmatpush1.bf16.msra.mxu0 %v499
    %712 = vmatprep.subr.bf16.mxu0 %v504
    %713 = vmatpush1.bf16.msra.mxu0 %v503
    %714 = vmatprep.subr.bf16.mxu0 0
    %715 = vmatpush1.bf16.msra.mxu0 0
    %716 = vmatprep.subr.bf16.mxu0 0
    %717 = vmatpush1.bf16.msra.mxu0 0
    %718 = vmatprep.subr.bf16.mxu0 0
    %719 = vmatpush1.bf16.msra.mxu0 0
    %720 = vmatprep.subr.bf16.mxu0 0
    %721 = vmatpush1.bf16.msra.mxu0 0
    %722 = vmatprep.subr.bf16.mxu0 0
    %723 = vmatpush1.bf16.msra.mxu0 0
    %724 = vmatprep.subr.bf16.mxu0 0
    %725 = vmatpush1.bf16.msra.mxu0 0
    %726 = vmatprep.subr.bf16.mxu0 0
    %727 = vmatpush1.bf16.msra.mxu0 0
    %728 = vmatprep.subr.bf16.mxu0 0
    %729 = vmatpush1.bf16.msra.mxu0 0
    %730 = vmatprep.mubr.bf16.mxu0 0
    %731 = vmatmul.mubr.bf16.gmra.mrb[0].mxu0 %v648
    %v732 = vpop.f32.mrb[0].mxu0
    %v733 = vadd.f32 0.0, %v732
    %v734 = vpop.f32.mrb[0].mxu0
    %v735 = vadd.f32 0.0, %v734
    %v736 = vpop.f32.mrb[0].mxu0
    %v737 = vpop.f32.mrb[0].mxu0
    %738 = vdwg.mxu0
    %v739 = vadd.f32 %v653, %v692
    %v740 = vadd.f32 %v654, %v694
    %v741 = vadd.f32 %v655, %v733
    %v742 = vadd.f32 %v656, %v735
    %v743 = vmul.f32 %v739, 0.5
    %v744 = vtanh.pop %v743
    %v745 = vadd.f32 %v744, 1.0
    %v746 = vmul.f32 %v745, 0.5
    %v747 = vmul.f32 %v740, 0.5
    %v748 = vtanh.pop %v747
    %v749 = vadd.f32 %v748, 1.0
    %v750 = vmul.f32 %v749, 0.5
    %v751 = vtanh.pop %v741
    %v752 = vmul.f32 %v742, 0.5
    %v753 = vtanh.pop %v752
    %v754 = vadd.f32 %v753, 1.0
    %v755 = vmul.f32 %v754, 0.5
    %v756 = vmul.f32 %v750, %v647
    %v757 = vmul.f32 %v746, %v751
    %v758 = vadd.f32 %v756, %v757
    %v759 = vtanh.pop %v758
    %v760 = vmul.f32 %v755, %v759
    %s761 = sadd.s32 %s641, 1
    %p762 = scmp.lt.s32.totalorder %s761, 8
    %s763 = scalar_select %p762, 1, 0
    %v764 = vstv %s763
    %vm765 = vcmp.eq.s32.totalorder %v764, 1
    %v766 = vsel %vm765, %v760, %v646
    %v767 = vsel %vm765, %v758, %v647
    %v768 = vpack.c.bf16 %v766, %v766
    %s769 = scalar_lea.vmem [#allocation11], 4
    %770 = vst [vmem:[%s769] sm:$0xf] %v768
    %s771 = smul.u32 2, 4
    %s772 = smul.addr %s771, 8
    %s773 = scalar_lea.vmem [#allocation2], %s772
    %v774 = vld [vmem:[%s773] sm:$0xff]
    %v775 = vld [vmem:[%s773 + $0x8] sm:$0xff]
    %v776 = vld [vmem:[%s773 + $0x10] sm:$0xff]
    %v777 = vld [vmem:[%s773 + $0x18] sm:$0xff]
    %778 = vmatprep.subr.bf16.mxu0 %v474
    %779 = vmatpush1.bf16.msra.mxu0 %v473
    %780 = vmatprep.subr.bf16.mxu0 %v478
    %781 = vmatpush1.bf16.msra.mxu0 %v477
    %782 = vmatprep.subr.bf16.mxu0 %v482
    %783 = vmatpush1.bf16.msra.mxu0 %v481
    %784 = vmatprep.subr.bf16.mxu0 %v486
    %785 = vmatpush1.bf16.msra.mxu0 %v485
    %786 = vmatprep.subr.bf16.mxu0 %v490
    %787 = vmatpush1.bf16.msra.mxu0 %v489
    %788 = vmatprep.subr.bf16.mxu0 %v494
    %789 = vmatpush1.bf16.msra.mxu0 %v493
    %790 = vmatprep.subr.bf16.mxu0 %v498
    %791 = vmatpush1.bf16.msra.mxu0 %v497
    %792 = vmatprep.subr.bf16.mxu0 %v502
    %793 = vmatpush1.bf16.msra.mxu0 %v501
    %794 = vmatprep.subr.bf16.mxu0 0
    %795 = vmatpush1.bf16.msra.mxu0 0
    %796 = vmatprep.subr.bf16.mxu0 0
    %797 = vmatpush1.bf16.msra.mxu0 0
    %798 = vmatprep.subr.bf16.mxu0 0
    %799 = vmatpush1.bf16.msra.mxu0 0
    %800 = vmatprep.subr.bf16.mxu0 0
    %801 = vmatpush1.bf16.msra.mxu0 0
    %802 = vmatprep.subr.bf16.mxu0 0
    %803 = vmatpush1.bf16.msra.mxu0 0
    %804 = vmatprep.subr.bf16.mxu0 0
    %805 = vmatpush1.bf16.msra.mxu0 0
    %806 = vmatprep.subr.bf16.mxu0 0
    %807 = vmatpush1.bf16.msra.mxu0 0
    %808 = vmatprep.subr.bf16.mxu0 0
    %809 = vmatpush1.bf16.msra.mxu0 0
    %810 = vmatprep.mubr.bf16.mxu0 0
    %811 = vmatmul.mubr.bf16.gmra.mrb[0].mxu0 %v768
    %v812 = vpop.f32.mrb[0].mxu0
    %v813 = vadd.f32 0.0, %v812
    %v814 = vpop.f32.mrb[0].mxu0
    %v815 = vadd.f32 0.0, %v814
    %v816 = vpop.f32.mrb[0].mxu0
    %v817 = vpop.f32.mrb[0].mxu0
    %818 = vdwg.mxu0
    %819 = vmatprep.subr.bf16.mxu0 %v476
    %820 = vmatpush1.bf16.msra.mxu0 %v475
    %821 = vmatprep.subr.bf16.mxu0 %v480
    %822 = vmatpush1.bf16.msra.mxu0 %v479
    %823 = vmatprep.subr.bf16.mxu0 %v484
    %824 = vmatpush1.bf16.msra.mxu0 %v483
    %825 = vmatprep.subr.bf16.mxu0 %v488
    %826 = vmatpush1.bf16.msra.mxu0 %v487
    %827 = vmatprep.subr.bf16.mxu0 %v492
    %828 = vmatpush1.bf16.msra.mxu0 %v491
    %829 = vmatprep.subr.bf16.mxu0 %v496
    %830 = vmatpush1.bf16.msra.mxu0 %v495
    %831 = vmatprep.subr.bf16.mxu0 %v500
    %832 = vmatpush1.bf16.msra.mxu0 %v499
    %833 = vmatprep.subr.bf16.mxu0 %v504
    %834 = vmatpush1.bf16.msra.mxu0 %v503
    %835 = vmatprep.subr.bf16.mxu0 0
    %836 = vmatpush1.bf16.msra.mxu0 0
    %837 = vmatprep.subr.bf16.mxu0 0
    %838 = vmatpush1.bf16.msra.mxu0 0
    %839 = vmatprep.subr.bf16.mxu0 0
    %840 = vmatpush1.bf16.msra.mxu0 0
    %841 = vmatprep.subr.bf16.mxu0 0
    %842 = vmatpush1.bf16.msra.mxu0 0
    %843 = vmatprep.subr.bf16.mxu0 0
    %844 = vmatpush1.bf16.msra.mxu0 0
    %845 = vmatprep.subr.bf16.mxu0 0
    %846 = vmatpush1.bf16.msra.mxu0 0
    %847 = vmatprep.subr.bf16.mxu0 0
    %848 = vmatpush1.bf16.msra.mxu0 0
    %849 = vmatprep.subr.bf16.mxu0 0
    %850 = vmatpush1.bf16.msra.mxu0 0
    %851 = vmatprep.mubr.bf16.mxu0 0
    %852 = vmatmul.mubr.bf16.gmra.mrb[0].mxu0 %v768
    %v853 = vpop.f32.mrb[0].mxu0
    %v854 = vadd.f32 0.0, %v853
    %v855 = vpop.f32.mrb[0].mxu0
    %v856 = vadd.f32 0.0, %v855
    %v857 = vpop.f32.mrb[0].mxu0
    %v858 = vpop.f32.mrb[0].mxu0
    %859 = vdwg.mxu0
    %v860 = vadd.f32 %v774, %v813
    %v861 = vadd.f32 %v775, %v815
    %v862 = vadd.f32 %v776, %v854
    %v863 = vadd.f32 %v777, %v856
    %v864 = vmul.f32 %v860, 0.5
    %v865 = vtanh.pop %v864
    %v866 = vadd.f32 %v865, 1.0
    %v867 = vmul.f32 %v866, 0.5
    %v868 = vmul.f32 %v861, 0.5
    %v869 = vtanh.pop %v868
    %v870 = vadd.f32 %v869, 1.0
    %v871 = vmul.f32 %v870, 0.5
    %v872 = vtanh.pop %v862
    %v873 = vmul.f32 %v863, 0.5
    %v874 = vtanh.pop %v873
    %v875 = vadd.f32 %v874, 1.0
    %v876 = vmul.f32 %v875, 0.5
    %v877 = vmul.f32 %v871, %v767
    %v878 = vmul.f32 %v867, %v872
    %v879 = vadd.f32 %v877, %v878
    %v880 = vtanh.pop %v879
    %v881 = vmul.f32 %v876, %v880
    %s882 = sadd.s32 %s641, 2
    %p883 = scmp.lt.s32.totalorder %s882, 8
    %s884 = scalar_select %p883, 1, 0
    %v885 = vstv %s884
    %vm886 = vcmp.eq.s32.totalorder %v885, 1
    %v887 = vsel %vm886, %v881, %v766
    %v888 = vsel %vm886, %v879, %v767
    %v889 = vpack.c.bf16 %v887, %v887
    %s890 = scalar_lea.vmem [#allocation11], 8
    %891 = vst [vmem:[%s890] sm:$0xf] %v889
    %s892 = smul.u32 3, 4
    %s893 = smul.addr %s892, 8
    %s894 = scalar_lea.vmem [#allocation2], %s893
    %v895 = vld [vmem:[%s894] sm:$0xff]
    %v896 = vld [vmem:[%s894 + $0x8] sm:$0xff]
    %v897 = vld [vmem:[%s894 + $0x10] sm:$0xff]
    %v898 = vld [vmem:[%s894 + $0x18] sm:$0xff]
    %899 = vmatprep.subr.bf16.mxu0 %v474
    %900 = vmatpush1.bf16.msra.mxu0 %v473
    %901 = vmatprep.subr.bf16.mxu0 %v478
    %902 = vmatpush1.bf16.msra.mxu0 %v477
    %903 = vmatprep.subr.bf16.mxu0 %v482
    %904 = vmatpush1.bf16.msra.mxu0 %v481
    %905 = vmatprep.subr.bf16.mxu0 %v486
    %906 = vmatpush1.bf16.msra.mxu0 %v485
    %907 = vmatprep.subr.bf16.mxu0 %v490
    %908 = vmatpush1.bf16.msra.mxu0 %v489
    %909 = vmatprep.subr.bf16.mxu0 %v494
    %910 = vmatpush1.bf16.msra.mxu0 %v493
    %911 = vmatprep.subr.bf16.mxu0 %v498
    %912 = vmatpush1.bf16.msra.mxu0 %v497
    %913 = vmatprep.subr.bf16.mxu0 %v502
    %914 = vmatpush1.bf16.msra.mxu0 %v501
    %915 = vmatprep.subr.bf16.mxu0 0
    %916 = vmatpush1.bf16.msra.mxu0 0
    %917 = vmatprep.subr.bf16.mxu0 0
    %918 = vmatpush1.bf16.msra.mxu0 0
    %919 = vmatprep.subr.bf16.mxu0 0
    %920 = vmatpush1.bf16.msra.mxu0 0
    %921 = vmatprep.subr.bf16.mxu0 0
    %922 = vmatpush1.bf16.msra.mxu0 0
    %923 = vmatprep.subr.bf16.mxu0 0
    %924 = vmatpush1.bf16.msra.mxu0 0
    %925 = vmatprep.subr.bf16.mxu0 0
    %926 = vmatpush1.bf16.msra.mxu0 0
    %927 = vmatprep.subr.bf16.mxu0 0
    %928 = vmatpush1.bf16.msra.mxu0 0
    %929 = vmatprep.subr.bf16.mxu0 0
    %930 = vmatpush1.bf16.msra.mxu0 0
    %931 = vmatprep.mubr.bf16.mxu0 0
    %932 = vmatmul.mubr.bf16.gmra.mrb[0].mxu0 %v889
    %v933 = vpop.f32.mrb[0].mxu0
    %v934 = vadd.f32 0.0, %v933
    %v935 = vpop.f32.mrb[0].mxu0
    %v936 = vadd.f32 0.0, %v935
    %v937 = vpop.f32.mrb[0].mxu0
    %v938 = vpop.f32.mrb[0].mxu0
    %939 = vdwg.mxu0
    %940 = vmatprep.subr.bf16.mxu0 %v476
    %941 = vmatpush1.bf16.msra.mxu0 %v475
    %942 = vmatprep.subr.bf16.mxu0 %v480
    %943 = vmatpush1.bf16.msra.mxu0 %v479
    %944 = vmatprep.subr.bf16.mxu0 %v484
    %945 = vmatpush1.bf16.msra.mxu0 %v483
    %946 = vmatprep.subr.bf16.mxu0 %v488
    %947 = vmatpush1.bf16.msra.mxu0 %v487
    %948 = vmatprep.subr.bf16.mxu0 %v492
    %949 = vmatpush1.bf16.msra.mxu0 %v491
    %950 = vmatprep.subr.bf16.mxu0 %v496
    %951 = vmatpush1.bf16.msra.mxu0 %v495
    %952 = vmatprep.subr.bf16.mxu0 %v500
    %953 = vmatpush1.bf16.msra.mxu0 %v499
    %954 = vmatprep.subr.bf16.mxu0 %v504
    %955 = vmatpush1.bf16.msra.mxu0 %v503
    %956 = vmatprep.subr.bf16.mxu0 0
    %957 = vmatpush1.bf16.msra.mxu0 0
    %958 = vmatprep.subr.bf16.mxu0 0
    %959 = vmatpush1.bf16.msra.mxu0 0
    %960 = vmatprep.subr.bf16.mxu0 0
    %961 = vmatpush1.bf16.msra.mxu0 0
    %962 = vmatprep.subr.bf16.mxu0 0
    %963 = vmatpush1.bf16.msra.mxu0 0
    %964 = vmatprep.subr.bf16.mxu0 0
    %965 = vmatpush1.bf16.msra.mxu0 0
    %966 = vmatprep.subr.bf16.mxu0 0
    %967 = vmatpush1.bf16.msra.mxu0 0
    %968 = vmatprep.subr.bf16.mxu0 0
    %969 = vmatpush1.bf16.msra.mxu0 0
    %970 = vmatprep.subr.bf16.mxu0 0
    %971 = vmatpush1.bf16.msra.mxu0 0
    %972 = vmatprep.mubr.bf16.mxu0 0
    %973 = vmatmul.mubr.bf16.gmra.mrb[0].mxu0 %v889
    %v974 = vpop.f32.mrb[0].mxu0
    %v975 = vadd.f32 0.0, %v974
    %v976 = vpop.f32.mrb[0].mxu0
    %v977 = vadd.f32 0.0, %v976
    %v978 = vpop.f32.mrb[0].mxu0
    %v979 = vpop.f32.mrb[0].mxu0
    %980 = vdwg.mxu0
    %v981 = vadd.f32 %v895, %v934
    %v982 = vadd.f32 %v896, %v936
    %v983 = vadd.f32 %v897, %v975
    %v984 = vadd.f32 %v898, %v977
    %v985 = vmul.f32 %v981, 0.5
    %v986 = vtanh.pop %v985
    %v987 = vadd.f32 %v986, 1.0
    %v988 = vmul.f32 %v987, 0.5
    %v989 = vmul.f32 %v982, 0.5
    %v990 = vtanh.pop %v989
    %v991 = vadd.f32 %v990, 1.0
    %v992 = vmul.f32 %v991, 0.5
    %v993 = vtanh.pop %v983
    %v994 = vmul.f32 %v984, 0.5
    %v995 = vtanh.pop %v994
    %v996 = vadd.f32 %v995, 1.0
    %v997 = vmul.f32 %v996, 0.5
    %v998 = vmul.f32 %v992, %v888
    %v999 = vmul.f32 %v988, %v993
    %v1000 = vadd.f32 %v998, %v999
    %v1001 = vtanh.pop %v1000
    %v1002 = vmul.f32 %v997, %v1001
    %s1003 = sadd.s32 %s641, 3
    %p1004 = scmp.lt.s32.totalorder %s1003, 8
    %s1005 = scalar_select %p1004, 1, 0
    %v1006 = vstv %s1005
    %vm1007 = vcmp.eq.s32.totalorder %v1006, 1
    %v1008 = vsel %vm1007, %v1002, %v887
    %v1009 = vsel %vm1007, %v1000, %v888
    %v1010 = vpack.c.bf16 %v1008, %v1008
    %s1011 = scalar_lea.vmem [#allocation11], 12
    %1012 = vst [vmem:[%s1011] sm:$0xf] %v1010
    %s1013 = smul.u32 4, 4
    %s1014 = smul.addr %s1013, 8
    %s1015 = scalar_lea.vmem [#allocation2], %s1014
    %v1016 = vld [vmem:[%s1015] sm:$0xff]
    %v1017 = vld [vmem:[%s1015 + $0x8] sm:$0xff]
    %v1018 = vld [vmem:[%s1015 + $0x10] sm:$0xff]
    %v1019 = vld [vmem:[%s1015 + $0x18] sm:$0xff]
    %1020 = vmatprep.subr.bf16.mxu0 %v474
    %1021 = vmatpush1.bf16.msra.mxu0 %v473
    %1022 = vmatprep.subr.bf16.mxu0 %v478
    %1023 = vmatpush1.bf16.msra.mxu0 %v477
    %1024 = vmatprep.subr.bf16.mxu0 %v482
    %1025 = vmatpush1.bf16.msra.mxu0 %v481
    %1026 = vmatprep.subr.bf16.mxu0 %v486
    %1027 = vmatpush1.bf16.msra.mxu0 %v485
    %1028 = vmatprep.subr.bf16.mxu0 %v490
    %1029 = vmatpush1.bf16.msra.mxu0 %v489
    %1030 = vmatprep.subr.bf16.mxu0 %v494
    %1031 = vmatpush1.bf16.msra.mxu0 %v493
    %1032 = vmatprep.subr.bf16.mxu0 %v498
    %1033 = vmatpush1.bf16.msra.mxu0 %v497
    %1034 = vmatprep.subr.bf16.mxu0 %v502
    %1035 = vmatpush1.bf16.msra.mxu0 %v501
    %1036 = vmatprep.subr.bf16.mxu0 0
    %1037 = vmatpush1.bf16.msra.mxu0 0
    %1038 = vmatprep.subr.bf16.mxu0 0
    %1039 = vmatpush1.bf16.msra.mxu0 0
    %1040 = vmatprep.subr.bf16.mxu0 0
    %1041 = vmatpush1.bf16.msra.mxu0 0
    %1042 = vmatprep.subr.bf16.mxu0 0
    %1043 = vmatpush1.bf16.msra.mxu0 0
    %1044 = vmatprep.subr.bf16.mxu0 0
    %1045 = vmatpush1.bf16.msra.mxu0 0
    %1046 = vmatprep.subr.bf16.mxu0 0
    %1047 = vmatpush1.bf16.msra.mxu0 0
    %1048 = vmatprep.subr.bf16.mxu0 0
    %1049 = vmatpush1.bf16.msra.mxu0 0
    %1050 = vmatprep.subr.bf16.mxu0 0
    %1051 = vmatpush1.bf16.msra.mxu0 0
    %1052 = vmatprep.mubr.bf16.mxu0 0
    %1053 = vmatmul.mubr.bf16.gmra.mrb[0].mxu0 %v1010
    %v1054 = vpop.f32.mrb[0].mxu0
    %v1055 = vadd.f32 0.0, %v1054
    %v1056 = vpop.f32.mrb[0].mxu0
    %v1057 = vadd.f32 0.0, %v1056
    %v1058 = vpop.f32.mrb[0].mxu0
    %v1059 = vpop.f32.mrb[0].mxu0
    %1060 = vdwg.mxu0
    %1061 = vmatprep.subr.bf16.mxu0 %v476
    %1062 = vmatpush1.bf16.msra.mxu0 %v475
    %1063 = vmatprep.subr.bf16.mxu0 %v480
    %1064 = vmatpush1.bf16.msra.mxu0 %v479
    %1065 = vmatprep.subr.bf16.mxu0 %v484
    %1066 = vmatpush1.bf16.msra.mxu0 %v483
    %1067 = vmatprep.subr.bf16.mxu0 %v488
    %1068 = vmatpush1.bf16.msra.mxu0 %v487
    %1069 = vmatprep.subr.bf16.mxu0 %v492
    %1070 = vmatpush1.bf16.msra.mxu0 %v491
    %1071 = vmatprep.subr.bf16.mxu0 %v496
    %1072 = vmatpush1.bf16.msra.mxu0 %v495
    %1073 = vmatprep.subr.bf16.mxu0 %v500
    %1074 = vmatpush1.bf16.msra.mxu0 %v499
    %1075 = vmatprep.subr.bf16.mxu0 %v504
    %1076 = vmatpush1.bf16.msra.mxu0 %v503
    %1077 = vmatprep.subr.bf16.mxu0 0
    %1078 = vmatpush1.bf16.msra.mxu0 0
    %1079 = vmatprep.subr.bf16.mxu0 0
    %1080 = vmatpush1.bf16.msra.mxu0 0
    %1081 = vmatprep.subr.bf16.mxu0 0
    %1082 = vmatpush1.bf16.msra.mxu0 0
    %1083 = vmatprep.subr.bf16.mxu0 0
    %1084 = vmatpush1.bf16.msra.mxu0 0
    %1085 = vmatprep.subr.bf16.mxu0 0
    %1086 = vmatpush1.bf16.msra.mxu0 0
    %1087 = vmatprep.subr.bf16.mxu0 0
    %1088 = vmatpush1.bf16.msra.mxu0 0
    %1089 = vmatprep.subr.bf16.mxu0 0
    %1090 = vmatpush1.bf16.msra.mxu0 0
    %1091 = vmatprep.subr.bf16.mxu0 0
    %1092 = vmatpush1.bf16.msra.mxu0 0
    %1093 = vmatprep.mubr.bf16.mxu0 0
    %1094 = vmatmul.mubr.bf16.gmra.mrb[0].mxu0 %v1010
    %v1095 = vpop.f32.mrb[0].mxu0
    %v1096 = vadd.f32 0.0, %v1095
    %v1097 = vpop.f32.mrb[0].mxu0
    %v1098 = vadd.f32 0.0, %v1097
    %v1099 = vpop.f32.mrb[0].mxu0
    %v1100 = vpop.f32.mrb[0].mxu0
    %1101 = vdwg.mxu0
    %v1102 = vadd.f32 %v1016, %v1055
    %v1103 = vadd.f32 %v1017, %v1057
    %v1104 = vadd.f32 %v1018, %v1096
    %v1105 = vadd.f32 %v1019, %v1098
    %v1106 = vmul.f32 %v1102, 0.5
    %v1107 = vtanh.pop %v1106
    %v1108 = vadd.f32 %v1107, 1.0
    %v1109 = vmul.f32 %v1108, 0.5
    %v1110 = vmul.f32 %v1103, 0.5
    %v1111 = vtanh.pop %v1110
    %v1112 = vadd.f32 %v1111, 1.0
    %v1113 = vmul.f32 %v1112, 0.5
    %v1114 = vtanh.pop %v1104
    %v1115 = vmul.f32 %v1105, 0.5
    %v1116 = vtanh.pop %v1115
    %v1117 = vadd.f32 %v1116, 1.0
    %v1118 = vmul.f32 %v1117, 0.5
    %v1119 = vmul.f32 %v1113, %v1009
    %v1120 = vmul.f32 %v1109, %v1114
    %v1121 = vadd.f32 %v1119, %v1120
    %v1122 = vtanh.pop %v1121
    %v1123 = vmul.f32 %v1118, %v1122
    %s1124 = sadd.s32 %s641, 4
    %p1125 = scmp.lt.s32.totalorder %s1124, 8
    %s1126 = scalar_select %p1125, 1, 0
    %v1127 = vstv %s1126
    %vm1128 = vcmp.eq.s32.totalorder %v1127, 1
    %v1129 = vsel %vm1128, %v1123, %v1008
    %v1130 = vsel %vm1128, %v1121, %v1009
    %v1131 = vpack.c.bf16 %v1129, %v1129
    %s1132 = scalar_lea.vmem [#allocation11], 16
    %1133 = vst [vmem:[%s1132] sm:$0xf] %v1131
    %s1134 = smul.u32 5, 4
    %s1135 = smul.addr %s1134, 8
    %s1136 = scalar_lea.vmem [#allocation2], %s1135
    %v1137 = vld [vmem:[%s1136] sm:$0xff]
    %v1138 = vld [vmem:[%s1136 + $0x8] sm:$0xff]
    %v1139 = vld [vmem:[%s1136 + $0x10] sm:$0xff]
    %v1140 = vld [vmem:[%s1136 + $0x18] sm:$0xff]
    %1141 = vmatprep.subr.bf16.mxu0 %v474
    %1142 = vmatpush1.bf16.msra.mxu0 %v473
    %1143 = vmatprep.subr.bf16.mxu0 %v478
    %1144 = vmatpush1.bf16.msra.mxu0 %v477
    %1145 = vmatprep.subr.bf16.mxu0 %v482
    %1146 = vmatpush1.bf16.msra.mxu0 %v481
    %1147 = vmatprep.subr.bf16.mxu0 %v486
    %1148 = vmatpush1.bf16.msra.mxu0 %v485
    %1149 = vmatprep.subr.bf16.mxu0 %v490
    %1150 = vmatpush1.bf16.msra.mxu0 %v489
    %1151 = vmatprep.subr.bf16.mxu0 %v494
    %1152 = vmatpush1.bf16.msra.mxu0 %v493
    %1153 = vmatprep.subr.bf16.mxu0 %v498
    %1154 = vmatpush1.bf16.msra.mxu0 %v497
    %1155 = vmatprep.subr.bf16.mxu0 %v502
    %1156 = vmatpush1.bf16.msra.mxu0 %v501
    %1157 = vmatprep.subr.bf16.mxu0 0
    %1158 = vmatpush1.bf16.msra.mxu0 0
    %1159 = vmatprep.subr.bf16.mxu0 0
    %1160 = vmatpush1.bf16.msra.mxu0 0
    %1161 = vmatprep.subr.bf16.mxu0 0
    %1162 = vmatpush1.bf16.msra.mxu0 0
    %1163 = vmatprep.subr.bf16.mxu0 0
    %1164 = vmatpush1.bf16.msra.mxu0 0
    %1165 = vmatprep.subr.bf16.mxu0 0
    %1166 = vmatpush1.bf16.msra.mxu0 0
    %1167 = vmatprep.subr.bf16.mxu0 0
    %1168 = vmatpush1.bf16.msra.mxu0 0
    %1169 = vmatprep.subr.bf16.mxu0 0
    %1170 = vmatpush1.bf16.msra.mxu0 0
    %1171 = vmatprep.subr.bf16.mxu0 0
    %1172 = vmatpush1.bf16.msra.mxu0 0
    %1173 = vmatprep.mubr.bf16.mxu0 0
    %1174 = vmatmul.mubr.bf16.gmra.mrb[0].mxu0 %v1131
    %v1175 = vpop.f32.mrb[0].mxu0
    %v1176 = vadd.f32 0.0, %v1175
    %v1177 = vpop.f32.mrb[0].mxu0
    %v1178 = vadd.f32 0.0, %v1177
    %v1179 = vpop.f32.mrb[0].mxu0
    %v1180 = vpop.f32.mrb[0].mxu0
    %1181 = vdwg.mxu0
    %1182 = vmatprep.subr.bf16.mxu0 %v476
    %1183 = vmatpush1.bf16.msra.mxu0 %v475
    %1184 = vmatprep.subr.bf16.mxu0 %v480
    %1185 = vmatpush1.bf16.msra.mxu0 %v479
    %1186 = vmatprep.subr.bf16.mxu0 %v484
    %1187 = vmatpush1.bf16.msra.mxu0 %v483
    %1188 = vmatprep.subr.bf16.mxu0 %v488
    %1189 = vmatpush1.bf16.msra.mxu0 %v487
    %1190 = vmatprep.subr.bf16.mxu0 %v492
    %1191 = vmatpush1.bf16.msra.mxu0 %v491
    %1192 = vmatprep.subr.bf16.mxu0 %v496
    %1193 = vmatpush1.bf16.msra.mxu0 %v495
    %1194 = vmatprep.subr.bf16.mxu0 %v500
    %1195 = vmatpush1.bf16.msra.mxu0 %v499
    %1196 = vmatprep.subr.bf16.mxu0 %v504
    %1197 = vmatpush1.bf16.msra.mxu0 %v503
    %1198 = vmatprep.subr.bf16.mxu0 0
    %1199 = vmatpush1.bf16.msra.mxu0 0
    %1200 = vmatprep.subr.bf16.mxu0 0
    %1201 = vmatpush1.bf16.msra.mxu0 0
    %1202 = vmatprep.subr.bf16.mxu0 0
    %1203 = vmatpush1.bf16.msra.mxu0 0
    %1204 = vmatprep.subr.bf16.mxu0 0
    %1205 = vmatpush1.bf16.msra.mxu0 0
    %1206 = vmatprep.subr.bf16.mxu0 0
    %1207 = vmatpush1.bf16.msra.mxu0 0
    %1208 = vmatprep.subr.bf16.mxu0 0
    %1209 = vmatpush1.bf16.msra.mxu0 0
    %1210 = vmatprep.subr.bf16.mxu0 0
    %1211 = vmatpush1.bf16.msra.mxu0 0
    %1212 = vmatprep.subr.bf16.mxu0 0
    %1213 = vmatpush1.bf16.msra.mxu0 0
    %1214 = vmatprep.mubr.bf16.mxu0 0
    %1215 = vmatmul.mubr.bf16.gmra.mrb[0].mxu0 %v1131
    %v1216 = vpop.f32.mrb[0].mxu0
    %v1217 = vadd.f32 0.0, %v1216
    %v1218 = vpop.f32.mrb[0].mxu0
    %v1219 = vadd.f32 0.0, %v1218
    %v1220 = vpop.f32.mrb[0].mxu0
    %v1221 = vpop.f32.mrb[0].mxu0
    %1222 = vdwg.mxu0
    %v1223 = vadd.f32 %v1137, %v1176
    %v1224 = vadd.f32 %v1138, %v1178
    %v1225 = vadd.f32 %v1139, %v1217
    %v1226 = vadd.f32 %v1140, %v1219
    %v1227 = vmul.f32 %v1223, 0.5
    %v1228 = vtanh.pop %v1227
    %v1229 = vadd.f32 %v1228, 1.0
    %v1230 = vmul.f32 %v1229, 0.5
    %v1231 = vmul.f32 %v1224, 0.5
    %v1232 = vtanh.pop %v1231
    %v1233 = vadd.f32 %v1232, 1.0
    %v1234 = vmul.f32 %v1233, 0.5
    %v1235 = vtanh.pop %v1225
    %v1236 = vmul.f32 %v1226, 0.5
    %v1237 = vtanh.pop %v1236
    %v1238 = vadd.f32 %v1237, 1.0
    %v1239 = vmul.f32 %v1238, 0.5
    %v1240 = vmul.f32 %v1234, %v1130
    %v1241 = vmul.f32 %v1230, %v1235
    %v1242 = vadd.f32 %v1240, %v1241
    %v1243 = vtanh.pop %v1242
    %v1244 = vmul.f32 %v1239, %v1243
    %s1245 = sadd.s32 %s641, 5
    %p1246 = scmp.lt.s32.totalorder %s1245, 8
    %s1247 = scalar_select %p1246, 1, 0
    %v1248 = vstv %s1247
    %vm1249 = vcmp.eq.s32.totalorder %v1248, 1
    %v1250 = vsel %vm1249, %v1244, %v1129
    %v1251 = vsel %vm1249, %v1242, %v1130
    %v1252 = vpack.c.bf16 %v1250, %v1250
    %s1253 = scalar_lea.vmem [#allocation11], 20
    %1254 = vst [vmem:[%s1253] sm:$0xf] %v1252
    %s1255 = smul.u32 6, 4
    %s1256 = smul.addr %s1255, 8
    %s1257 = scalar_lea.vmem [#allocation2], %s1256
    %v1258 = vld [vmem:[%s1257] sm:$0xff]
    %v1259 = vld [vmem:[%s1257 + $0x8] sm:$0xff]
    %v1260 = vld [vmem:[%s1257 + $0x10] sm:$0xff]
    %v1261 = vld [vmem:[%s1257 + $0x18] sm:$0xff]
    %1262 = vmatprep.subr.bf16.mxu0 %v474
    %1263 = vmatpush1.bf16.msra.mxu0 %v473
    %1264 = vmatprep.subr.bf16.mxu0 %v478
    %1265 = vmatpush1.bf16.msra.mxu0 %v477
    %1266 = vmatprep.subr.bf16.mxu0 %v482
    %1267 = vmatpush1.bf16.msra.mxu0 %v481
    %1268 = vmatprep.subr.bf16.mxu0 %v486
    %1269 = vmatpush1.bf16.msra.mxu0 %v485
    %1270 = vmatprep.subr.bf16.mxu0 %v490
    %1271 = vmatpush1.bf16.msra.mxu0 %v489
    %1272 = vmatprep.subr.bf16.mxu0 %v494
    %1273 = vmatpush1.bf16.msra.mxu0 %v493
    %1274 = vmatprep.subr.bf16.mxu0 %v498
    %1275 = vmatpush1.bf16.msra.mxu0 %v497
    %1276 = vmatprep.subr.bf16.mxu0 %v502
    %1277 = vmatpush1.bf16.msra.mxu0 %v501
    %1278 = vmatprep.subr.bf16.mxu0 0
    %1279 = vmatpush1.bf16.msra.mxu0 0
    %1280 = vmatprep.subr.bf16.mxu0 0
    %1281 = vmatpush1.bf16.msra.mxu0 0
    %1282 = vmatprep.subr.bf16.mxu0 0
    %1283 = vmatpush1.bf16.msra.mxu0 0
    %1284 = vmatprep.subr.bf16.mxu0 0
    %1285 = vmatpush1.bf16.msra.mxu0 0
    %1286 = vmatprep.subr.bf16.mxu0 0
    %1287 = vmatpush1.bf16.msra.mxu0 0
    %1288 = vmatprep.subr.bf16.mxu0 0
    %1289 = vmatpush1.bf16.msra.mxu0 0
    %1290 = vmatprep.subr.bf16.mxu0 0
    %1291 = vmatpush1.bf16.msra.mxu0 0
    %1292 = vmatprep.subr.bf16.mxu0 0
    %1293 = vmatpush1.bf16.msra.mxu0 0
    %1294 = vmatprep.mubr.bf16.mxu0 0
    %1295 = vmatmul.mubr.bf16.gmra.mrb[0].mxu0 %v1252
    %v1296 = vpop.f32.mrb[0].mxu0
    %v1297 = vadd.f32 0.0, %v1296
    %v1298 = vpop.f32.mrb[0].mxu0
    %v1299 = vadd.f32 0.0, %v1298
    %v1300 = vpop.f32.mrb[0].mxu0
    %v1301 = vpop.f32.mrb[0].mxu0
    %1302 = vdwg.mxu0
    %1303 = vmatprep.subr.bf16.mxu0 %v476
    %1304 = vmatpush1.bf16.msra.mxu0 %v475
    %1305 = vmatprep.subr.bf16.mxu0 %v480
    %1306 = vmatpush1.bf16.msra.mxu0 %v479
    %1307 = vmatprep.subr.bf16.mxu0 %v484
    %1308 = vmatpush1.bf16.msra.mxu0 %v483
    %1309 = vmatprep.subr.bf16.mxu0 %v488
    %1310 = vmatpush1.bf16.msra.mxu0 %v487
    %1311 = vmatprep.subr.bf16.mxu0 %v492
    %1312 = vmatpush1.bf16.msra.mxu0 %v491
    %1313 = vmatprep.subr.bf16.mxu0 %v496
    %1314 = vmatpush1.bf16.msra.mxu0 %v495
    %1315 = vmatprep.subr.bf16.mxu0 %v500
    %1316 = vmatpush1.bf16.msra.mxu0 %v499
    %1317 = vmatprep.subr.bf16.mxu0 %v504
    %1318 = vmatpush1.bf16.msra.mxu0 %v503
    %1319 = vmatprep.subr.bf16.mxu0 0
    %1320 = vmatpush1.bf16.msra.mxu0 0
    %1321 = vmatprep.subr.bf16.mxu0 0
    %1322 = vmatpush1.bf16.msra.mxu0 0
    %1323 = vmatprep.subr.bf16.mxu0 0
    %1324 = vmatpush1.bf16.msra.mxu0 0
    %1325 = vmatprep.subr.bf16.mxu0 0
    %1326 = vmatpush1.bf16.msra.mxu0 0
    %1327 = vmatprep.subr.bf16.mxu0 0
    %1328 = vmatpush1.bf16.msra.mxu0 0
    %1329 = vmatprep.subr.bf16.mxu0 0
    %1330 = vmatpush1.bf16.msra.mxu0 0
    %1331 = vmatprep.subr.bf16.mxu0 0
    %1332 = vmatpush1.bf16.msra.mxu0 0
    %1333 = vmatprep.subr.bf16.mxu0 0
    %1334 = vmatpush1.bf16.msra.mxu0 0
    %1335 = vmatprep.mubr.bf16.mxu0 0
    %1336 = vmatmul.mubr.bf16.gmra.mrb[0].mxu0 %v1252
    %v1337 = vpop.f32.mrb[0].mxu0
    %v1338 = vadd.f32 0.0, %v1337
    %v1339 = vpop.f32.mrb[0].mxu0
    %v1340 = vadd.f32 0.0, %v1339
    %v1341 = vpop.f32.mrb[0].mxu0
    %v1342 = vpop.f32.mrb[0].mxu0
    %1343 = vdwg.mxu0
    %v1344 = vadd.f32 %v1258, %v1297
    %v1345 = vadd.f32 %v1259, %v1299
    %v1346 = vadd.f32 %v1260, %v1338
    %v1347 = vadd.f32 %v1261, %v1340
    %v1348 = vmul.f32 %v1344, 0.5
    %v1349 = vtanh.pop %v1348
    %v1350 = vadd.f32 %v1349, 1.0
    %v1351 = vmul.f32 %v1350, 0.5
    %v1352 = vmul.f32 %v1345, 0.5
    %v1353 = vtanh.pop %v1352
    %v1354 = vadd.f32 %v1353, 1.0
    %v1355 = vmul.f32 %v1354, 0.5
    %v1356 = vtanh.pop %v1346
    %v1357 = vmul.f32 %v1347, 0.5
    %v1358 = vtanh.pop %v1357
    %v1359 = vadd.f32 %v1358, 1.0
    %v1360 = vmul.f32 %v1359, 0.5
    %v1361 = vmul.f32 %v1355, %v1251
    %v1362 = vmul.f32 %v1351, %v1356
    %v1363 = vadd.f32 %v1361, %v1362
    %v1364 = vtanh.pop %v1363
    %v1365 = vmul.f32 %v1360, %v1364
    %s1366 = sadd.s32 %s641, 6
    %p1367 = scmp.lt.s32.totalorder %s1366, 8
    %s1368 = scalar_select %p1367, 1, 0
    %v1369 = vstv %s1368
    %vm1370 = vcmp.eq.s32.totalorder %v1369, 1
    %v1371 = vsel %vm1370, %v1365, %v1250
    %v1372 = vsel %vm1370, %v1363, %v1251
    %v1373 = vpack.c.bf16 %v1371, %v1371
    %s1374 = scalar_lea.vmem [#allocation11], 24
    %1375 = vst [vmem:[%s1374] sm:$0xf] %v1373
    %s1376 = smul.u32 7, 4
    %s1377 = smul.addr %s1376, 8
    %s1378 = scalar_lea.vmem [#allocation2], %s1377
    %v1379 = vld [vmem:[%s1378] sm:$0xff]
    %v1380 = vld [vmem:[%s1378 + $0x8] sm:$0xff]
    %v1381 = vld [vmem:[%s1378 + $0x10] sm:$0xff]
    %v1382 = vld [vmem:[%s1378 + $0x18] sm:$0xff]
    %1383 = vmatprep.subr.bf16.mxu0 %v474
    %1384 = vmatpush1.bf16.msra.mxu0 %v473
    %1385 = vmatprep.subr.bf16.mxu0 %v478
    %1386 = vmatpush1.bf16.msra.mxu0 %v477
    %1387 = vmatprep.subr.bf16.mxu0 %v482
    %1388 = vmatpush1.bf16.msra.mxu0 %v481
    %1389 = vmatprep.subr.bf16.mxu0 %v486
    %1390 = vmatpush1.bf16.msra.mxu0 %v485
    %1391 = vmatprep.subr.bf16.mxu0 %v490
    %1392 = vmatpush1.bf16.msra.mxu0 %v489
    %1393 = vmatprep.subr.bf16.mxu0 %v494
    %1394 = vmatpush1.bf16.msra.mxu0 %v493
    %1395 = vmatprep.subr.bf16.mxu0 %v498
    %1396 = vmatpush1.bf16.msra.mxu0 %v497
    %1397 = vmatprep.subr.bf16.mxu0 %v502
    %1398 = vmatpush1.bf16.msra.mxu0 %v501
    %1399 = vmatprep.subr.bf16.mxu0 0
    %1400 = vmatpush1.bf16.msra.mxu0 0
    %1401 = vmatprep.subr.bf16.mxu0 0
    %1402 = vmatpush1.bf16.msra.mxu0 0
    %1403 = vmatprep.subr.bf16.mxu0 0
    %1404 = vmatpush1.bf16.msra.mxu0 0
    %1405 = vmatprep.subr.bf16.mxu0 0
    %1406 = vmatpush1.bf16.msra.mxu0 0
    %1407 = vmatprep.subr.bf16.mxu0 0
    %1408 = vmatpush1.bf16.msra.mxu0 0
    %1409 = vmatprep.subr.bf16.mxu0 0
    %1410 = vmatpush1.bf16.msra.mxu0 0
    %1411 = vmatprep.subr.bf16.mxu0 0
    %1412 = vmatpush1.bf16.msra.mxu0 0
    %1413 = vmatprep.subr.bf16.mxu0 0
    %1414 = vmatpush1.bf16.msra.mxu0 0
    %1415 = vmatprep.mubr.bf16.mxu0 0
    %1416 = vmatmul.mubr.bf16.gmra.mrb[0].mxu0 %v1373
    %v1417 = vpop.f32.mrb[0].mxu0
    %v1418 = vadd.f32 0.0, %v1417
    %v1419 = vpop.f32.mrb[0].mxu0
    %v1420 = vadd.f32 0.0, %v1419
    %v1421 = vpop.f32.mrb[0].mxu0
    %v1422 = vpop.f32.mrb[0].mxu0
    %1423 = vdwg.mxu0
    %1424 = vmatprep.subr.bf16.mxu0 %v476
    %1425 = vmatpush1.bf16.msra.mxu0 %v475
    %1426 = vmatprep.subr.bf16.mxu0 %v480
    %1427 = vmatpush1.bf16.msra.mxu0 %v479
    %1428 = vmatprep.subr.bf16.mxu0 %v484
    %1429 = vmatpush1.bf16.msra.mxu0 %v483
    %1430 = vmatprep.subr.bf16.mxu0 %v488
    %1431 = vmatpush1.bf16.msra.mxu0 %v487
    %1432 = vmatprep.subr.bf16.mxu0 %v492
    %1433 = vmatpush1.bf16.msra.mxu0 %v491
    %1434 = vmatprep.subr.bf16.mxu0 %v496
    %1435 = vmatpush1.bf16.msra.mxu0 %v495
    %1436 = vmatprep.subr.bf16.mxu0 %v500
    %1437 = vmatpush1.bf16.msra.mxu0 %v499
    %1438 = vmatprep.subr.bf16.mxu0 %v504
    %1439 = vmatpush1.bf16.msra.mxu0 %v503
    %1440 = vmatprep.subr.bf16.mxu0 0
    %1441 = vmatpush1.bf16.msra.mxu0 0
    %1442 = vmatprep.subr.bf16.mxu0 0
    %1443 = vmatpush1.bf16.msra.mxu0 0
    %1444 = vmatprep.subr.bf16.mxu0 0
    %1445 = vmatpush1.bf16.msra.mxu0 0
    %1446 = vmatprep.subr.bf16.mxu0 0
    %1447 = vmatpush1.bf16.msra.mxu0 0
    %1448 = vmatprep.subr.bf16.mxu0 0
    %1449 = vmatpush1.bf16.msra.mxu0 0
    %1450 = vmatprep.subr.bf16.mxu0 0
    %1451 = vmatpush1.bf16.msra.mxu0 0
    %1452 = vmatprep.subr.bf16.mxu0 0
    %1453 = vmatpush1.bf16.msra.mxu0 0
    %1454 = vmatprep.subr.bf16.mxu0 0
    %1455 = vmatpush1.bf16.msra.mxu0 0
    %1456 = vmatprep.mubr.bf16.mxu0 0
    %1457 = vmatmul.mubr.bf16.gmra.mrb[0].mxu0 %v1373
    %v1458 = vpop.f32.mrb[0].mxu0
    %v1459 = vadd.f32 0.0, %v1458
    %v1460 = vpop.f32.mrb[0].mxu0
    %v1461 = vadd.f32 0.0, %v1460
    %v1462 = vpop.f32.mrb[0].mxu0
    %v1463 = vpop.f32.mrb[0].mxu0
    %1464 = vdwg.mxu0
    %v1465 = vadd.f32 %v1379, %v1418
    %v1466 = vadd.f32 %v1380, %v1420
    %v1467 = vadd.f32 %v1381, %v1459
    %v1468 = vadd.f32 %v1382, %v1461
    %v1469 = vmul.f32 %v1465, 0.5
    %v1470 = vtanh.pop %v1469
    %v1471 = vadd.f32 %v1470, 1.0
    %v1472 = vmul.f32 %v1471, 0.5
    %v1473 = vmul.f32 %v1466, 0.5
    %v1474 = vtanh.pop %v1473
    %v1475 = vadd.f32 %v1474, 1.0
    %v1476 = vmul.f32 %v1475, 0.5
    %v1477 = vtanh.pop %v1467
    %v1478 = vmul.f32 %v1468, 0.5
    %v1479 = vtanh.pop %v1478
    %v1480 = vadd.f32 %v1479, 1.0
    %v1481 = vmul.f32 %v1480, 0.5
    %v1482 = vmul.f32 %v1476, %v1372
    %v1483 = vmul.f32 %v1472, %v1477
    %v1484 = vadd.f32 %v1482, %v1483
    %v1485 = vtanh.pop %v1484
    %v1486 = vmul.f32 %v1481, %v1485
    %s1487 = sadd.s32 %s641, 7
    %p1488 = scmp.lt.s32.totalorder %s1487, 8
    %s1489 = scalar_select %p1488, 1, 0
    %v1490 = vstv %s1489
    %vm1491 = vcmp.eq.s32.totalorder %v1490, 1
    %v1492 = vsel %vm1491, %v1486, %v1371
    %v1493 = vsel %vm1491, %v1484, %v1372
    %v1494 = vpack.c.bf16 %v1492, %v1492
    %s1495 = scalar_lea.vmem [#allocation11], 28
    %1496 = vst [vmem:[%s1495] sm:$0xf] %v1494
    %1497 = vst [vmem:[#allocation3] sm:$0xff] %v1492
    %1498 = vst [vmem:[#allocation4] sm:$0xff] %v1493
    // Predicated region
    $region34: #{tpu_custom_call.1} parent=1 // pred_check
      %p1499 = pneg %p64
    $region35: #{tpu_custom_call.1} parent=1 // pred_check_branch
      %1501 = sbr.rel (%p1499) target = $region37
    $region36: #{tpu_custom_call.1} parent=1 // pred_region
      %1502 = vst [vmem:[#allocation12] sm:$0xff] %v1492
      %1503 = vst [vmem:[#allocation14] sm:$0xff] %v1493
    $region37: #{tpu_custom_call.1} parent=1 // pred_fallthru
      _
    // Predicated region
    $region38: #{tpu_custom_call.1} parent=1 // pred_check
      _
    $region39: #{tpu_custom_call.1} parent=1 // pred_check_branch
      %1505 = sbr.rel (0) target = $region41
    $region40: #{tpu_custom_call.1} parent=1 // pred_region
      %s1507 = ssub.s32 512, 512
      %1508 = vsyncadd [#allocation7], %s1507
      %s1509 = sshll.u32 [#allocation11], 4
      %s1510 = int_to_ptr.vmem [resolvable:$true] %s1509
      %1515 = dma.vmem_to_hbm [thread:$0]  %s1510, 512, %s4, [#allocation7], 64, 64, 4
    $region41: #{tpu_custom_call.1} parent=1 // pred_fallthru
      _
    // Predicated region
    $region42: #{tpu_custom_call.1} parent=1 // pred_check
      _
    $region43: #{tpu_custom_call.1} parent=1 // pred_check_branch
      %1517 = sbr.rel (0) target = $region45
    $region44: #{tpu_custom_call.1} parent=1 // pred_region
      %s1519 = ssub.s32 128, 128
      %1520 = vsyncadd [#allocation13], %s1519
      %s1522 = sshll.u32 [#allocation12], 4
      %s1523 = int_to_ptr.vmem [resolvable:$true] %s1522
      %1525 = dma.vmem_to_hbm [thread:$0]  %s1523, 128, %s5, [#allocation13]
    $region45: #{tpu_custom_call.1} parent=1 // pred_fallthru
      _
    // Predicated region
    $region46: #{tpu_custom_call.1} parent=1 // pred_check
      _
    $region47: #{tpu_custom_call.1} parent=1 // pred_check_branch
      %1527 = sbr.rel (0) target = $region49
    $region48: #{tpu_custom_call.1} parent=1 // pred_region
      %s1529 = ssub.s32 128, 128
      %1530 = vsyncadd [#allocation13], %s1529
      %s1532 = sshll.u32 [#allocation14], 4
      %s1533 = int_to_ptr.vmem [resolvable:$true] %s1532
      %1535 = dma.vmem_to_hbm [thread:$0]  %s1533, 128, %s6, [#allocation13]
    $region49: #{tpu_custom_call.1} parent=1 // pred_fallthru
      _
    // Predicated region
    $region50: #{tpu_custom_call.1} parent=1 // pred_check
      _
    $region51: #{tpu_custom_call.1} parent=1 // pred_check_branch
      %1537 = sbr.rel (0) target = $region53
    $region52: #{tpu_custom_call.1} parent=1 // pred_region
      %1538 = dma.done [#allocation7], 512
    $region53: #{tpu_custom_call.1} parent=1 // pred_fallthru
      _
    // Predicated region
    $region54: #{tpu_custom_call.1} parent=1 // pred_check
      _
    $region55: #{tpu_custom_call.1} parent=1 // pred_check_branch
      %1540 = sbr.rel (0) target = $region57
    $region56: #{tpu_custom_call.1} parent=1 // pred_region
      %1541 = dma.done [#allocation13], 128
    $region57: #{tpu_custom_call.1} parent=1 // pred_fallthru
      _
    // Predicated region
    $region58: #{tpu_custom_call.1} parent=1 // pred_check
      _
    $region59: #{tpu_custom_call.1} parent=1 // pred_check_branch
      %1543 = sbr.rel (0) target = $region61
    $region60: #{tpu_custom_call.1} parent=1 // pred_region
      %1544 = dma.done [#allocation13], 128
    $region61: #{tpu_custom_call.1} parent=1 // pred_fallthru
      _
    %1545 = vsyncpa [#allocation6], 1
    %1546 = vsyncpa [#allocation9], 1
    %1547 = vsyncpa [#allocation7], 1
    %1548 = vsyncpa [#allocation13], 1

</llo_original>
